<compile_context>
chip_gen: v7x
topology: tpu7x:2x2x1
jax: 0.10.0
libtpu: 0.0.40
codegen_flags: <defaults>
</compile_context>

<pallas_src>
import functools
import math

import jax
import jax.numpy as jnp
import numpy as np
from jax.experimental import pallas as pl
from jax.experimental.pallas import tpu as pltpu


def _leaky(v):
    # Reference: F.leaky_relu(x, 0.2) (explicit slope, not the 0.01 default).
    return jnp.where(v >= 0.0, v, 0.2 * v)


def _round_up8(n):
    return ((int(n) + 7) // 8) * 8


# ---------------------------------------------------------------------------
# Offline weight assembly (lane packing via block-diagonal weights).
# ---------------------------------------------------------------------------
def _block_diag(w, g):
    """(Cin, Cout) -> (G*Cin, G*Cout) block-diagonal (one block per batch group)."""
    cin, cout = w.shape
    out = jnp.zeros((g * cin, g * cout), w.dtype)
    for i in range(g):
        out = out.at[i * cin:(i + 1) * cin, i * cout:(i + 1) * cout].set(w)
    return out


def _stack_taps_bd(w_taps, g):
    """(T, C, C) -> (T*G*C, G*C): taps stacked along rows, block-diag per group."""
    return jnp.concatenate([_block_diag(w_taps[t], g)
                            for t in range(w_taps.shape[0])], axis=0)


def _upsampler_fused_bd(wup, g):
    """ConvTranspose1d(C, C, 4, stride=2, padding=1) folded into one matrix.

    even out[2t]   = x[t] @ W1 + x[t-1] @ W3
    odd  out[2t+1] = x[t] @ W2 + x[t+1] @ W0
    acting on concat([x[t-1], x[t], x[t+1]], lanes): (3*G*C, 2*G*C).
    """
    gc = g * wup.shape[-1]
    z = jnp.zeros((gc, gc), wup.dtype)
    w0, w1, w2, w3 = (_block_diag(wup[k], g) for k in range(4))
    top = jnp.concatenate([w3, z], axis=1)     # x[t-1] -> (even, odd)
    mid = jnp.concatenate([w1, w2], axis=1)    # x[t]
    bot = jnp.concatenate([z, w0], axis=1)     # x[t+1]
    return jnp.concatenate([top, mid, bot], axis=0)


def _head_weight_bd(w_tail, g, c):
    """(K, C) folded head weights -> (G, K*G*C).

    Row g picks group g's channels of every tap, so the whole head is one
    transposed matmul with time mapped to lanes in the result.
    """
    k = w_tail.shape[0]
    out = jnp.zeros((g, k * g * c), w_tail.dtype)
    for ki in range(k):
        for gi in range(g):
            s = ki * g * c + gi * c
            out = out.at[gi, s:s + c].set(w_tail[ki])
    return out


# ---------------------------------------------------------------------------
# In-kernel helpers.
# ---------------------------------------------------------------------------
def _fill_scratch(buf_ref, x_f32, halo, L):
    """Zero ONLY the halo rows, then store the activation (review item)."""
    gc = buf_ref.shape[-1]
    zeros = jnp.zeros((halo, gc), buf_ref.dtype)
    buf_ref[pl.ds(0, halo), :] = zeros
    buf_ref[pl.ds(halo + L, halo), :] = zeros
    buf_ref[pl.ds(halo, L), :] = x_f32.astype(buf_ref.dtype)


def _dilated_convs(buf_ref, wd_ref, dilations, halo, L):
    """x = leaky(x + Conv1d(x, k=3, dil=d, pad=3d//2)[:L]) for each dilation.

    The 3 taps are concatenated on lanes and hit the MXU as one K=3*G*C matmul.
    """
    for i, d in enumerate(dilations):
        pad = 3 * d // 2
        taps = jnp.concatenate(
            [buf_ref[pl.ds(halo - pad + j * d, L), :].astype(jnp.bfloat16)
             for j in range(3)], axis=-1)                       # (L, 3*GC)
        conv = jnp.dot(taps, wd_ref[i], preferred_element_type=jnp.float32)
        res = buf_ref[pl.ds(halo, L), :]                         # residual, f32
        buf_ref[pl.ds(halo, L), :] = _leaky(res + conv)


# ---------------------------------------------------------------------------
# Kernel 1: fused GeneratorBlock with upsample_factor=2
#   (optional fused embedding + 3 dilated residual convs + ConvTranspose1d)
# ---------------------------------------------------------------------------
def _up_block_kernel(*refs, dilations, halo, fuse_embed):
    if fuse_embed:
        x_ref, w_in_ref, wd_ref, wup_ref, o_ref, buf_ref = refs
    else:
        x_ref, wd_ref, wup_ref, o_ref, buf_ref = refs
        w_in_ref = None
    L = x_ref.shape[1]

    x = x_ref[0]
    if fuse_embed:
        x = _leaky(jnp.dot(x, w_in_ref[...], preferred_element_type=jnp.float32))
    else:
        x = x.astype(jnp.float32)
    _fill_scratch(buf_ref, x, halo, L)
    _dilated_convs(buf_ref, wd_ref, dilations, halo, L)

    # Transposed-conv upsampler: both phases in a single matmul, one store.
    ops = jnp.concatenate(
        [buf_ref[pl.ds(halo - 1, L), :].astype(jnp.bfloat16),
         buf_ref[pl.ds(halo, L), :].astype(jnp.bfloat16),
         buf_ref[pl.ds(halo + 1, L), :].astype(jnp.bfloat16)], axis=-1)
    up = jnp.dot(ops, wup_ref[...], preferred_element_type=jnp.float32)
    o_ref[0] = _leaky(up).astype(o_ref.dtype)                    # (L, 2*GC)


def _up_block(x, w_in, wd_bd, wup_bd, dilations):
    Bq, L, Cin = x.shape
    GC = wd_bd.shape[-1]
    halo = _round_up8(max(3 * d // 2 for d in dilations))
    fuse = w_in is not None
    kernel = functools.partial(_up_block_kernel, dilations=tuple(dilations),
                               halo=halo, fuse_embed=fuse)

    in_specs = [pl.BlockSpec((1, L, Cin), lambda b: (b, 0, 0))]
    args = [x]
    if fuse:
        in_specs.append(pl.BlockSpec(w_in.shape, lambda b: (0, 0)))
        args.append(w_in)
    in_specs += [pl.BlockSpec(wd_bd.shape, lambda b: (0, 0, 0)),
                 pl.BlockSpec(wup_bd.shape, lambda b: (0, 0))]
    args += [wd_bd, wup_bd]

    out = pl.pallas_call(
        kernel,
        out_shape=jax.ShapeDtypeStruct((Bq, L, 2 * GC), jnp.bfloat16),
        grid_spec=pltpu.PrefetchScalarGridSpec(
            num_scalar_prefetch=0,
            grid=(Bq,),
            in_specs=in_specs,
            out_specs=pl.BlockSpec((1, L, 2 * GC), lambda b: (b, 0, 0)),
            scratch_shapes=[pltpu.VMEM((L + 2 * halo, GC), jnp.float32)]),
        compiler_params=pltpu.CompilerParams(
            dimension_semantics=("parallel",),
            vmem_limit_bytes=64 * 1024 * 1024),
    )(*args)
    # TODO(synk): replace with an in-kernel strided sublane store into the next
    # block's scratch; this reshape is a relayout (one HBM RT of dense payload).
    return out.reshape(Bq, 2 * L, GC)


# ---------------------------------------------------------------------------
# Kernel 2: fused final GeneratorBlock (no upsample) + folded output head.
# ---------------------------------------------------------------------------
def _final_block_kernel(*refs, dilations, halo, fb_k, fuse_embed):
    if fuse_embed:
        x_ref, w_in_ref, wd_ref, wh_ref, o_ref, buf_ref = refs
    else:
        x_ref, wd_ref, wh_ref, o_ref, buf_ref = refs
        w_in_ref = None
    L = x_ref.shape[1]

    x = x_ref[0]
    if fuse_embed:
        x = _leaky(jnp.dot(x, w_in_ref[...], preferred_element_type=jnp.float32))
    else:
        x = x.astype(jnp.float32)
    _fill_scratch(buf_ref, x, halo, L)
    _dilated_convs(buf_ref, wd_ref, dilations, halo, L)

    # Output head: samples[g, t] = sum_k emb_ext[t + K//2 - k - 1, g*C:(g+1)*C]
    # . w_tail[k] * |scale|, computed as ONE transposed matmul so the result is
    # (G, L) with time on lanes (lane-dense output store).
    pad_fb = fb_k // 2
    taps = jnp.concatenate(
        [buf_ref[pl.ds(halo + pad_fb - k - 1, L), :].astype(jnp.bfloat16)
         for k in range(fb_k)], axis=-1)                         # (L, K*GC)
    samples = jax.lax.dot_general(
        wh_ref[...], taps, (((1,), (1,)), ((), ())),
        preferred_element_type=jnp.float32)                      # (G, L)
    o_ref[0] = samples.astype(o_ref.dtype)


def _final_block(x, w_in, wd_bd, w_head, dilations, fb_k):
    Bq, L, Cin = x.shape
    GC = wd_bd.shape[-1]
    G = w_head.shape[0]
    halo = _round_up8(max(max(3 * d // 2 for d in dilations), fb_k // 2 + 1))
    fuse = w_in is not None
    kernel = functools.partial(_final_block_kernel, dilations=tuple(dilations),
                               halo=halo, fb_k=fb_k, fuse_embed=fuse)

    in_specs = [pl.BlockSpec((1, L, Cin), lambda b: (b, 0, 0))]
    args = [x]
    if fuse:
        in_specs.append(pl.BlockSpec(w_in.shape, lambda b: (0, 0)))
        args.append(w_in)
    in_specs += [pl.BlockSpec(wd_bd.shape, lambda b: (0, 0, 0)),
                 pl.BlockSpec(w_head.shape, lambda b: (0, 0))]
    args += [wd_bd, w_head]

    return pl.pallas_call(
        kernel,
        out_shape=jax.ShapeDtypeStruct((Bq, G, L), jnp.float32),
        grid_spec=pltpu.PrefetchScalarGridSpec(
            num_scalar_prefetch=0,
            grid=(Bq,),
            in_specs=in_specs,
            out_specs=pl.BlockSpec((1, G, L), lambda b: (b, 0, 0)),
            scratch_shapes=[pltpu.VMEM((L + 2 * halo, GC), jnp.float32)]),
        compiler_params=pltpu.CompilerParams(
            dimension_semantics=("parallel",),
            vmem_limit_bytes=64 * 1024 * 1024),
    )(*args)


# ---------------------------------------------------------------------------
# ChannelGenerator
# ---------------------------------------------------------------------------
class ChannelGenerator:
    DILATIONS = (1, 3, 9)

    def __init__(self, input_size, target_size, in_channels, channels,
                 fb_channels, fb_kernel_size, sl, key):
        self.input_size = input_size
        self.target_size = target_size
        self.in_channels = in_channels
        self.channels = channels
        self.fb_channels = fb_channels
        self.fb_kernel_size = fb_kernel_size
        self.sl = sl
        emb_in = sl.stop - sl.start

        # Lane packing group: pack G batch elements so activations are
        # G*channels = 128 lanes wide (block-diagonal weights keep them
        # independent).  G=1 when channels >= 128.
        self.group = max(1, 128 // channels)
        G = self.group

        def normal(k, shape, fan_in):
            w = jax.random.normal(k, shape, jnp.float32)
            return w * jnp.float32(1.0 / math.sqrt(fan_in))

        keys = iter(jax.random.split(key, 64))

        # embedding 1x1 conv (fused into the first block's scratch fill).
        w_emb = normal(next(keys), (emb_in, channels), emb_in)
        self.w_emb_bd = _block_diag(w_emb, G).astype(jnp.bfloat16)

        # upsampling GeneratorBlocks + one final (non-upsampling) block.
        n_layers = int(np.log2(target_size) - np.log2(input_size))
        self.up_blocks = []
        for _ in range(n_layers):
            wd = normal(next(keys), (3, 3, channels, channels), 3 * channels)
            wup = normal(next(keys), (4, channels, channels), 4 * channels)
            wd_bd = jnp.stack([_stack_taps_bd(wd[i], G) for i in range(3)])
            self.up_blocks.append(
                (wd_bd.astype(jnp.bfloat16),
                 _upsampler_fused_bd(wup, G).astype(jnp.bfloat16)))
        wd_f = normal(next(keys), (3, 3, channels, channels), 3 * channels)
        self.wd_final_bd = jnp.stack(
            [_stack_taps_bd(wd_f[i], G) for i in range(3)]).astype(jnp.bfloat16)

        # Output head: to_samples (1x1 conv, padding=1, bias-free) folded with
        # the filter-bank transposed conv and |scale| into one weight.
        # TODO(synk): fb.transposed_convolve comes from an external filter-bank
        # object; modeled as a bias-free ConvTranspose1d(padding=K//2) with a
        # randomly initialized filter bank, folded offline.
        w_ts = normal(next(keys), (channels, fb_channels), channels)
        fb = normal(next(keys), (fb_kernel_size, fb_channels),
                    fb_kernel_size * fb_channels)
        scale = jnp.float32(0.0001)
        w_tail = jnp.einsum("cf,kf->kc", w_ts, fb) * jnp.abs(scale)   # (K, C)
        self.w_head_bd = _head_weight_bd(w_tail, G, channels).astype(jnp.bfloat16)

    def forward(self, x):
        # x: (B, in_channels, input_size) -- PyTorch NCW, f32
        B = x.shape[0]
        G = self.group
        x = x.reshape(B, -1, self.input_size)[:, self.sl, :]      # (B, emb_in, L0)
        x = jnp.transpose(x, (0, 2, 1)).astype(jnp.bfloat16)      # (B, L0, emb_in)

        # Pack G batch elements along lanes: (B, L0, E) -> (B/G, L0, G*E).
        Bp = ((B + G - 1) // G) * G
        if Bp != B:
            x = jnp.pad(x, ((0, Bp - B), (0, 0), (0, 0)))
        L0, E = x.shape[1], x.shape[2]
        x = x.reshape(Bp // G, G, L0, E).transpose(0, 2, 1, 3).reshape(
            Bp // G, L0, G * E)

        h = x
        w_in = self.w_emb_bd          # embedding fused into the first block
        for wd_bd, wup_bd in self.up_blocks:                      # each doubles L
            h = _up_block(h, w_in, wd_bd, wup_bd, self.DILATIONS)
            w_in = None
        samples = _final_block(h, w_in, self.wd_final_bd, self.w_head_bd,
                               self.DILATIONS, self.fb_kernel_size)
        # (Bp/G, G, T): unpack the batch groups; time is already on lanes.
        samples = samples.reshape(Bp, -1)[:B, :self.target_size]
        return samples[:, None, :]                                # (B, 1, T) f32


# ---------------------------------------------------------------------------
if __name__ == "__main__":
    key = jax.random.PRNGKey(0)
    k_param, k_input = jax.random.split(key)

    batch = 2
    in_channels = 8
    input_size = 8
    target_size = 16
    channels = 32
    fb_channels = 16
    fb_kernel_size = 7
    sl = slice(2, 6)

    gen = ChannelGenerator(input_size, target_size, in_channels, channels,
                           fb_channels, fb_kernel_size, sl, k_param)

    x = jax.random.normal(k_input, (batch, in_channels, input_size),
                          jnp.float32)

    fwd = jax.jit(gen.forward)
    out = jax.block_until_ready(fwd(x))

    assert out.shape == (batch, 1, target_size), out.shape
    assert bool(jnp.all(jnp.isfinite(out)))
    print("KERNEL_OK")
</pallas_src>

<mosaic_0001>
module attributes {stable_mosaic.version = 11 : i64} {
  func.func @_final_block_kernel(%arg0: i32, %arg1: memref<1x16x128xbf16, #tpu.memory_space<vmem>>, %arg2: memref<3x384x128xbf16, #tpu.memory_space<vmem>>, %arg3: memref<4x896xbf16, #tpu.memory_space<vmem>>, %arg4: memref<1x4x16xf32, #tpu.memory_space<vmem>>, %arg5: memref<48x128xf32, #tpu.memory_space<vmem>>) attributes {dimension_semantics = [#tpu.dimension_semantics<parallel>], iteration_bounds = array<i64: 1>, scalar_prefetch = 0 : i64, scratch_operands = 1 : i64, tpu.core_type = #tpu.core_type<tc>, window_params = [{transform_indices = @transform_0, window_bounds = array<i64: 1, 16, 128>}, {pipeline_mode = #tpu.pipeline_mode<synchronous>, transform_indices = @transform_1, window_bounds = array<i64: 3, 384, 128>}, {pipeline_mode = #tpu.pipeline_mode<synchronous>, transform_indices = @transform_2, window_bounds = array<i64: 4, 896>}, {transform_indices = @transform_3, window_bounds = array<i64: 1, 4, 16>}]} {
    %c0 = arith.constant 0 : index
    %c0_0 = arith.constant 0 : index
    %c0_1 = arith.constant 0 : index
    %0 = vector.load %arg1[%c0, %c0_0, %c0_1] : memref<1x16x128xbf16, #tpu.memory_space<vmem>>, vector<1x16x128xbf16>
    %1 = vector.shape_cast %0 : vector<1x16x128xbf16> to vector<16x128xbf16>
    %2 = arith.extf %1 : vector<16x128xbf16> to vector<16x128xf32>
    %cst = arith.constant 0.000000e+00 : f32
    %3 = vector.broadcast %cst : f32 to vector<16x128xf32>
    %c0_2 = arith.constant 0 : index
    %c0_3 = arith.constant 0 : index
    %4 = vector.load %arg5[%c0_2, %c0_3] : memref<48x128xf32, #tpu.memory_space<vmem>>, vector<16x128xf32>
    tpu.vector_store %arg5[%c0_2, %c0_3], %3 {strides = array<i32>} : memref<48x128xf32, #tpu.memory_space<vmem>>, vector<16x128xf32>,
    %c32 = arith.constant 32 : index
    %c0_4 = arith.constant 0 : index
    %5 = vector.load %arg5[%c32, %c0_4] : memref<48x128xf32, #tpu.memory_space<vmem>>, vector<16x128xf32>
    tpu.vector_store %arg5[%c32, %c0_4], %3 {strides = array<i32>} : memref<48x128xf32, #tpu.memory_space<vmem>>, vector<16x128xf32>,
    %c16 = arith.constant 16 : index
    %c0_5 = arith.constant 0 : index
    %6 = vector.load %arg5[%c16, %c0_5] : memref<48x128xf32, #tpu.memory_space<vmem>>, vector<16x128xf32>
    tpu.vector_store %arg5[%c16, %c0_5], %2 {strides = array<i32>} : memref<48x128xf32, #tpu.memory_space<vmem>>, vector<16x128xf32>,
    %c15 = arith.constant 15 : index
    %c0_6 = arith.constant 0 : index
    %7 = vector.load %arg5[%c15, %c0_6] : memref<48x128xf32, #tpu.memory_space<vmem>>, vector<16x128xf32>
    %8 = arith.truncf %7 : vector<16x128xf32> to vector<16x128xbf16>
    %c16_7 = arith.constant 16 : index
    %c0_8 = arith.constant 0 : index
    %9 = vector.load %arg5[%c16_7, %c0_8] : memref<48x128xf32, #tpu.memory_space<vmem>>, vector<16x128xf32>
    %10 = arith.truncf %9 : vector<16x128xf32> to vector<16x128xbf16>
    %c17 = arith.constant 17 : index
    %c0_9 = arith.constant 0 : index
    %11 = vector.load %arg5[%c17, %c0_9] : memref<48x128xf32, #tpu.memory_space<vmem>>, vector<16x128xf32>
    %12 = arith.truncf %11 : vector<16x128xf32> to vector<16x128xbf16>
    %13 = tpu.concatenate %8, %10, %12 in 1 : vector<16x128xbf16>, vector<16x128xbf16>, vector<16x128xbf16> -> vector<16x384xbf16>
    %c0_10 = arith.constant 0 : index
    %c0_11 = arith.constant 0 : index
    %c0_12 = arith.constant 0 : index
    %14 = vector.load %arg2[%c0_10, %c0_11, %c0_12] : memref<3x384x128xbf16, #tpu.memory_space<vmem>>, vector<1x384x128xbf16>
    %15 = vector.shape_cast %14 : vector<1x384x128xbf16> to vector<384x128xbf16>
    %cst_13 = arith.constant dense<0.000000e+00> : vector<16x128xf32>
    %16 = tpu.matmul %13, %15, %cst_13 {dimension_numbers = #tpu.dot_dimension_numbers<[1], [0], [0], [1], [0, 0, 1, 1], [], []>} : vector<16x384xbf16>, vector<384x128xbf16>, vector<16x128xf32> -> vector<16x128xf32>
    %c16_14 = arith.constant 16 : index
    %c0_15 = arith.constant 0 : index
    %17 = vector.load %arg5[%c16_14, %c0_15] : memref<48x128xf32, #tpu.memory_space<vmem>>, vector<16x128xf32>
    %18 = arith.addf %17, %16 : vector<16x128xf32>
    %cst_16 = arith.constant 0.000000e+00 : f32
    %19 = vector.broadcast %cst_16 : f32 to vector<16x128xf32>
    %20 = arith.cmpf oge, %18, %19 : vector<16x128xf32>
    %cst_17 = arith.constant 2.000000e-01 : f32
    %21 = vector.broadcast %cst_17 : f32 to vector<16x128xf32>
    %22 = arith.mulf %21, %18 : vector<16x128xf32>
    %23 = arith.select %20, %18, %22 : vector<16x128xi1>, vector<16x128xf32>
    %c16_18 = arith.constant 16 : index
    %c0_19 = arith.constant 0 : index
    %24 = vector.load %arg5[%c16_18, %c0_19] : memref<48x128xf32, #tpu.memory_space<vmem>>, vector<16x128xf32>
    tpu.vector_store %arg5[%c16_18, %c0_19], %23 {strides = array<i32>} : memref<48x128xf32, #tpu.memory_space<vmem>>, vector<16x128xf32>,
    %c12 = arith.constant 12 : index
    %c0_20 = arith.constant 0 : index
    %25 = vector.load %arg5[%c12, %c0_20] : memref<48x128xf32, #tpu.memory_space<vmem>>, vector<16x128xf32>
    %26 = arith.truncf %25 : vector<16x128xf32> to vector<16x128xbf16>
    %c15_21 = arith.constant 15 : index
    %c0_22 = arith.constant 0 : index
    %27 = vector.load %arg5[%c15_21, %c0_22] : memref<48x128xf32, #tpu.memory_space<vmem>>, vector<16x128xf32>
    %28 = arith.truncf %27 : vector<16x128xf32> to vector<16x128xbf16>
    %c18 = arith.constant 18 : index
    %c0_23 = arith.constant 0 : index
    %29 = vector.load %arg5[%c18, %c0_23] : memref<48x128xf32, #tpu.memory_space<vmem>>, vector<16x128xf32>
    %30 = arith.truncf %29 : vector<16x128xf32> to vector<16x128xbf16>
    %31 = tpu.concatenate %26, %28, %30 in 1 : vector<16x128xbf16>, vector<16x128xbf16>, vector<16x128xbf16> -> vector<16x384xbf16>
    %c1 = arith.constant 1 : index
    %c0_24 = arith.constant 0 : index
    %c0_25 = arith.constant 0 : index
    %32 = vector.load %arg2[%c1, %c0_24, %c0_25] : memref<3x384x128xbf16, #tpu.memory_space<vmem>>, vector<1x384x128xbf16>
    %33 = vector.shape_cast %32 : vector<1x384x128xbf16> to vector<384x128xbf16>
    %cst_26 = arith.constant dense<0.000000e+00> : vector<16x128xf32>
    %34 = tpu.matmul %31, %33, %cst_26 {dimension_numbers = #tpu.dot_dimension_numbers<[1], [0], [0], [1], [0, 0, 1, 1], [], []>} : vector<16x384xbf16>, vector<384x128xbf16>, vector<16x128xf32> -> vector<16x128xf32>
    %c16_27 = arith.constant 16 : index
    %c0_28 = arith.constant 0 : index
    %35 = vector.load %arg5[%c16_27, %c0_28] : memref<48x128xf32, #tpu.memory_space<vmem>>, vector<16x128xf32>
    %36 = arith.addf %35, %34 : vector<16x128xf32>
    %cst_29 = arith.constant 0.000000e+00 : f32
    %37 = vector.broadcast %cst_29 : f32 to vector<16x128xf32>
    %38 = arith.cmpf oge, %36, %37 : vector<16x128xf32>
    %cst_30 = arith.constant 2.000000e-01 : f32
    %39 = vector.broadcast %cst_30 : f32 to vector<16x128xf32>
    %40 = arith.mulf %39, %36 : vector<16x128xf32>
    %41 = arith.select %38, %36, %40 : vector<16x128xi1>, vector<16x128xf32>
    %c16_31 = arith.constant 16 : index
    %c0_32 = arith.constant 0 : index
    %42 = vector.load %arg5[%c16_31, %c0_32] : memref<48x128xf32, #tpu.memory_space<vmem>>, vector<16x128xf32>
    tpu.vector_store %arg5[%c16_31, %c0_32], %41 {strides = array<i32>} : memref<48x128xf32, #tpu.memory_space<vmem>>, vector<16x128xf32>,
    %c3 = arith.constant 3 : index
    %c0_33 = arith.constant 0 : index
    %43 = vector.load %arg5[%c3, %c0_33] : memref<48x128xf32, #tpu.memory_space<vmem>>, vector<16x128xf32>
    %44 = arith.truncf %43 : vector<16x128xf32> to vector<16x128xbf16>
    %c12_34 = arith.constant 12 : index
    %c0_35 = arith.constant 0 : index
    %45 = vector.load %arg5[%c12_34, %c0_35] : memref<48x128xf32, #tpu.memory_space<vmem>>, vector<16x128xf32>
    %46 = arith.truncf %45 : vector<16x128xf32> to vector<16x128xbf16>
    %c21 = arith.constant 21 : index
    %c0_36 = arith.constant 0 : index
    %47 = vector.load %arg5[%c21, %c0_36] : memref<48x128xf32, #tpu.memory_space<vmem>>, vector<16x128xf32>
    %48 = arith.truncf %47 : vector<16x128xf32> to vector<16x128xbf16>
    %49 = tpu.concatenate %44, %46, %48 in 1 : vector<16x128xbf16>, vector<16x128xbf16>, vector<16x128xbf16> -> vector<16x384xbf16>
    %c2 = arith.constant 2 : index
    %c0_37 = arith.constant 0 : index
    %c0_38 = arith.constant 0 : index
    %50 = vector.load %arg2[%c2, %c0_37, %c0_38] : memref<3x384x128xbf16, #tpu.memory_space<vmem>>, vector<1x384x128xbf16>
    %51 = vector.shape_cast %50 : vector<1x384x128xbf16> to vector<384x128xbf16>
    %cst_39 = arith.constant dense<0.000000e+00> : vector<16x128xf32>
    %52 = tpu.matmul %49, %51, %cst_39 {dimension_numbers = #tpu.dot_dimension_numbers<[1], [0], [0], [1], [0, 0, 1, 1], [], []>} : vector<16x384xbf16>, vector<384x128xbf16>, vector<16x128xf32> -> vector<16x128xf32>
    %c16_40 = arith.constant 16 : index
    %c0_41 = arith.constant 0 : index
    %53 = vector.load %arg5[%c16_40, %c0_41] : memref<48x128xf32, #tpu.memory_space<vmem>>, vector<16x128xf32>
    %54 = arith.addf %53, %52 : vector<16x128xf32>
    %cst_42 = arith.constant 0.000000e+00 : f32
    %55 = vector.broadcast %cst_42 : f32 to vector<16x128xf32>
    %56 = arith.cmpf oge, %54, %55 : vector<16x128xf32>
    %cst_43 = arith.constant 2.000000e-01 : f32
    %57 = vector.broadcast %cst_43 : f32 to vector<16x128xf32>
    %58 = arith.mulf %57, %54 : vector<16x128xf32>
    %59 = arith.select %56, %54, %58 : vector<16x128xi1>, vector<16x128xf32>
    %c16_44 = arith.constant 16 : index
    %c0_45 = arith.constant 0 : index
    %60 = vector.load %arg5[%c16_44, %c0_45] : memref<48x128xf32, #tpu.memory_space<vmem>>, vector<16x128xf32>
    tpu.vector_store %arg5[%c16_44, %c0_45], %59 {strides = array<i32>} : memref<48x128xf32, #tpu.memory_space<vmem>>, vector<16x128xf32>,
    %c18_46 = arith.constant 18 : index
    %c0_47 = arith.constant 0 : index
    %61 = vector.load %arg5[%c18_46, %c0_47] : memref<48x128xf32, #tpu.memory_space<vmem>>, vector<16x128xf32>
    %62 = arith.truncf %61 : vector<16x128xf32> to vector<16x128xbf16>
    %c17_48 = arith.constant 17 : index
    %c0_49 = arith.constant 0 : index
    %63 = vector.load %arg5[%c17_48, %c0_49] : memref<48x128xf32, #tpu.memory_space<vmem>>, vector<16x128xf32>
    %64 = arith.truncf %63 : vector<16x128xf32> to vector<16x128xbf16>
    %c16_50 = arith.constant 16 : index
    %c0_51 = arith.constant 0 : index
    %65 = vector.load %arg5[%c16_50, %c0_51] : memref<48x128xf32, #tpu.memory_space<vmem>>, vector<16x128xf32>
    %66 = arith.truncf %65 : vector<16x128xf32> to vector<16x128xbf16>
    %c15_52 = arith.constant 15 : index
    %c0_53 = arith.constant 0 : index
    %67 = vector.load %arg5[%c15_52, %c0_53] : memref<48x128xf32, #tpu.memory_space<vmem>>, vector<16x128xf32>
    %68 = arith.truncf %67 : vector<16x128xf32> to vector<16x128xbf16>
    %c14 = arith.constant 14 : index
    %c0_54 = arith.constant 0 : index
    %69 = vector.load %arg5[%c14, %c0_54] : memref<48x128xf32, #tpu.memory_space<vmem>>, vector<16x128xf32>
    %70 = arith.truncf %69 : vector<16x128xf32> to vector<16x128xbf16>
    %c13 = arith.constant 13 : index
    %c0_55 = arith.constant 0 : index
    %71 = vector.load %arg5[%c13, %c0_55] : memref<48x128xf32, #tpu.memory_space<vmem>>, vector<16x128xf32>
    %72 = arith.truncf %71 : vector<16x128xf32> to vector<16x128xbf16>
    %c12_56 = arith.constant 12 : index
    %c0_57 = arith.constant 0 : index
    %73 = vector.load %arg5[%c12_56, %c0_57] : memref<48x128xf32, #tpu.memory_space<vmem>>, vector<16x128xf32>
    %74 = arith.truncf %73 : vector<16x128xf32> to vector<16x128xbf16>
    %75 = tpu.concatenate %62, %64, %66, %68, %70, %72, %74 in 1 : vector<16x128xbf16>, vector<16x128xbf16>, vector<16x128xbf16>, vector<16x128xbf16>, vector<16x128xbf16>, vector<16x128xbf16>, vector<16x128xbf16> -> vector<16x896xbf16>
    %c0_58 = arith.constant 0 : index
    %c0_59 = arith.constant 0 : index
    %76 = vector.load %arg3[%c0_58, %c0_59] : memref<4x896xbf16, #tpu.memory_space<vmem>>, vector<4x896xbf16>
    %cst_60 = arith.constant dense<0.000000e+00> : vector<4x16xf32>
    %77 = tpu.matmul %76, %75, %cst_60 {dimension_numbers = #tpu.dot_dimension_numbers<[1], [1], [0], [0], [0, 0, 1, 0], [], []>} : vector<4x896xbf16>, vector<16x896xbf16>, vector<4x16xf32> -> vector<4x16xf32>
    %c0_61 = arith.constant 0 : index
    %c0_62 = arith.constant 0 : index
    %c0_63 = arith.constant 0 : index
    %78 = vector.load %arg4[%c0_61, %c0_62, %c0_63] : memref<1x4x16xf32, #tpu.memory_space<vmem>>, vector<1x4x16xf32>
    %79 = vector.shape_cast %78 : vector<1x4x16xf32> to vector<4x16xf32>
    %80 = vector.shape_cast %77 : vector<4x16xf32> to vector<1x4x16xf32>
    tpu.vector_store %arg4[%c0_61, %c0_62, %c0_63], %80 {strides = array<i32>} : memref<1x4x16xf32, #tpu.memory_space<vmem>>, vector<1x4x16xf32>,
    return
  }
  func.func @transform_0(%arg0: i32) -> (i32, i32, i32) {
    %c0_i32 = arith.constant 0 : i32
    %c0_i32_0 = arith.constant 0 : i32
    %c0_i32_1 = arith.constant 0 : i32
    return %arg0, %c0_i32, %c0_i32_0 : i32, i32, i32
  }
  func.func @transform_1(%arg0: i32) -> (i32, i32, i32) {
    %c0_i32 = arith.constant 0 : i32
    %c0_i32_0 = arith.constant 0 : i32
    %c0_i32_1 = arith.constant 0 : i32
    %c0_i32_2 = arith.constant 0 : i32
    return %c0_i32, %c0_i32_0, %c0_i32_1 : i32, i32, i32
  }
  func.func @transform_2(%arg0: i32) -> (i32, i32) {
    %c0_i32 = arith.constant 0 : i32
    %c0_i32_0 = arith.constant 0 : i32
    %c0_i32_1 = arith.constant 0 : i32
    return %c0_i32, %c0_i32_0 : i32, i32
  }
  func.func @transform_3(%arg0: i32) -> (i32, i32, i32) {
    %c0_i32 = arith.constant 0 : i32
    %c0_i32_0 = arith.constant 0 : i32
    %c0_i32_1 = arith.constant 0 : i32
    return %arg0, %c0_i32, %c0_i32_0 : i32, i32, i32
  }
}

module attributes {stable_mosaic.version = 11 : i64} {
  func.func @_up_block_kernel(%arg0: i32, %arg1: memref<1x8x16xbf16, #tpu.memory_space<vmem>>, %arg2: memref<16x128xbf16, #tpu.memory_space<vmem>>, %arg3: memref<3x384x128xbf16, #tpu.memory_space<vmem>>, %arg4: memref<384x256xbf16, #tpu.memory_space<vmem>>, %arg5: memref<1x8x256xbf16, #tpu.memory_space<vmem>>, %arg6: memref<40x128xf32, #tpu.memory_space<vmem>>) attributes {dimension_semantics = [#tpu.dimension_semantics<parallel>], iteration_bounds = array<i64: 1>, scalar_prefetch = 0 : i64, scratch_operands = 1 : i64, tpu.core_type = #tpu.core_type<tc>, window_params = [{transform_indices = @transform_0, window_bounds = array<i64: 1, 8, 16>}, {pipeline_mode = #tpu.pipeline_mode<synchronous>, transform_indices = @transform_1, window_bounds = array<i64: 16, 128>}, {pipeline_mode = #tpu.pipeline_mode<synchronous>, transform_indices = @transform_2, window_bounds = array<i64: 3, 384, 128>}, {pipeline_mode = #tpu.pipeline_mode<synchronous>, transform_indices = @transform_3, window_bounds = array<i64: 384, 256>}, {transform_indices = @transform_4, window_bounds = array<i64: 1, 8, 256>}]} {
    %c0 = arith.constant 0 : index
    %c0_0 = arith.constant 0 : index
    %c0_1 = arith.constant 0 : index
    %0 = vector.load %arg1[%c0, %c0_0, %c0_1] : memref<1x8x16xbf16, #tpu.memory_space<vmem>>, vector<1x8x16xbf16>
    %1 = vector.shape_cast %0 : vector<1x8x16xbf16> to vector<8x16xbf16>
    %c0_2 = arith.constant 0 : index
    %c0_3 = arith.constant 0 : index
    %2 = vector.load %arg2[%c0_2, %c0_3] : memref<16x128xbf16, #tpu.memory_space<vmem>>, vector<16x128xbf16>
    %cst = arith.constant dense<0.000000e+00> : vector<8x128xf32>
    %3 = tpu.matmul %1, %2, %cst {dimension_numbers = #tpu.dot_dimension_numbers<[1], [0], [0], [1], [0, 0, 1, 1], [], []>} : vector<8x16xbf16>, vector<16x128xbf16>, vector<8x128xf32> -> vector<8x128xf32>
    %cst_4 = arith.constant 0.000000e+00 : f32
    %4 = vector.broadcast %cst_4 : f32 to vector<8x128xf32>
    %5 = arith.cmpf oge, %3, %4 : vector<8x128xf32>
    %cst_5 = arith.constant 2.000000e-01 : f32
    %6 = vector.broadcast %cst_5 : f32 to vector<8x128xf32>
    %7 = arith.mulf %6, %3 : vector<8x128xf32>
    %8 = arith.select %5, %3, %7 : vector<8x128xi1>, vector<8x128xf32>
    %cst_6 = arith.constant 0.000000e+00 : f32
    %9 = vector.broadcast %cst_6 : f32 to vector<16x128xf32>
    %c0_7 = arith.constant 0 : index
    %c0_8 = arith.constant 0 : index
    %10 = vector.load %arg6[%c0_7, %c0_8] : memref<40x128xf32, #tpu.memory_space<vmem>>, vector<16x128xf32>
    tpu.vector_store %arg6[%c0_7, %c0_8], %9 {strides = array<i32>} : memref<40x128xf32, #tpu.memory_space<vmem>>, vector<16x128xf32>,
    %c24 = arith.constant 24 : index
    %c0_9 = arith.constant 0 : index
    %11 = vector.load %arg6[%c24, %c0_9] : memref<40x128xf32, #tpu.memory_space<vmem>>, vector<16x128xf32>
    tpu.vector_store %arg6[%c24, %c0_9], %9 {strides = array<i32>} : memref<40x128xf32, #tpu.memory_space<vmem>>, vector<16x128xf32>,
    %c16 = arith.constant 16 : index
    %c0_10 = arith.constant 0 : index
    %12 = vector.load %arg6[%c16, %c0_10] : memref<40x128xf32, #tpu.memory_space<vmem>>, vector<8x128xf32>
    tpu.vector_store %arg6[%c16, %c0_10], %8 {strides = array<i32>} : memref<40x128xf32, #tpu.memory_space<vmem>>, vector<8x128xf32>,
    %c15 = arith.constant 15 : index
    %c0_11 = arith.constant 0 : index
    %13 = vector.load %arg6[%c15, %c0_11] : memref<40x128xf32, #tpu.memory_space<vmem>>, vector<8x128xf32>
    %14 = arith.truncf %13 : vector<8x128xf32> to vector<8x128xbf16>
    %c16_12 = arith.constant 16 : index
    %c0_13 = arith.constant 0 : index
    %15 = vector.load %arg6[%c16_12, %c0_13] : memref<40x128xf32, #tpu.memory_space<vmem>>, vector<8x128xf32>
    %16 = arith.truncf %15 : vector<8x128xf32> to vector<8x128xbf16>
    %c17 = arith.constant 17 : index
    %c0_14 = arith.constant 0 : index
    %17 = vector.load %arg6[%c17, %c0_14] : memref<40x128xf32, #tpu.memory_space<vmem>>, vector<8x128xf32>
    %18 = arith.truncf %17 : vector<8x128xf32> to vector<8x128xbf16>
    %19 = tpu.concatenate %14, %16, %18 in 1 : vector<8x128xbf16>, vector<8x128xbf16>, vector<8x128xbf16> -> vector<8x384xbf16>
    %c0_15 = arith.constant 0 : index
    %c0_16 = arith.constant 0 : index
    %c0_17 = arith.constant 0 : index
    %20 = vector.load %arg3[%c0_15, %c0_16, %c0_17] : memref<3x384x128xbf16, #tpu.memory_space<vmem>>, vector<1x384x128xbf16>
    %21 = vector.shape_cast %20 : vector<1x384x128xbf16> to vector<384x128xbf16>
    %cst_18 = arith.constant dense<0.000000e+00> : vector<8x128xf32>
    %22 = tpu.matmul %19, %21, %cst_18 {dimension_numbers = #tpu.dot_dimension_numbers<[1], [0], [0], [1], [0, 0, 1, 1], [], []>} : vector<8x384xbf16>, vector<384x128xbf16>, vector<8x128xf32> -> vector<8x128xf32>
    %c16_19 = arith.constant 16 : index
    %c0_20 = arith.constant 0 : index
    %23 = vector.load %arg6[%c16_19, %c0_20] : memref<40x128xf32, #tpu.memory_space<vmem>>, vector<8x128xf32>
    %24 = arith.addf %23, %22 : vector<8x128xf32>
    %cst_21 = arith.constant 0.000000e+00 : f32
    %25 = vector.broadcast %cst_21 : f32 to vector<8x128xf32>
    %26 = arith.cmpf oge, %24, %25 : vector<8x128xf32>
    %cst_22 = arith.constant 2.000000e-01 : f32
    %27 = vector.broadcast %cst_22 : f32 to vector<8x128xf32>
    %28 = arith.mulf %27, %24 : vector<8x128xf32>
    %29 = arith.select %26, %24, %28 : vector<8x128xi1>, vector<8x128xf32>
    %c16_23 = arith.constant 16 : index
    %c0_24 = arith.constant 0 : index
    %30 = vector.load %arg6[%c16_23, %c0_24] : memref<40x128xf32, #tpu.memory_space<vmem>>, vector<8x128xf32>
    tpu.vector_store %arg6[%c16_23, %c0_24], %29 {strides = array<i32>} : memref<40x128xf32, #tpu.memory_space<vmem>>, vector<8x128xf32>,
    %c12 = arith.constant 12 : index
    %c0_25 = arith.constant 0 : index
    %31 = vector.load %arg6[%c12, %c0_25] : memref<40x128xf32, #tpu.memory_space<vmem>>, vector<8x128xf32>
    %32 = arith.truncf %31 : vector<8x128xf32> to vector<8x128xbf16>
    %c15_26 = arith.constant 15 : index
    %c0_27 = arith.constant 0 : index
    %33 = vector.load %arg6[%c15_26, %c0_27] : memref<40x128xf32, #tpu.memory_space<vmem>>, vector<8x128xf32>
    %34 = arith.truncf %33 : vector<8x128xf32> to vector<8x128xbf16>
    %c18 = arith.constant 18 : index
    %c0_28 = arith.constant 0 : index
    %35 = vector.load %arg6[%c18, %c0_28] : memref<40x128xf32, #tpu.memory_space<vmem>>, vector<8x128xf32>
    %36 = arith.truncf %35 : vector<8x128xf32> to vector<8x128xbf16>
    %37 = tpu.concatenate %32, %34, %36 in 1 : vector<8x128xbf16>, vector<8x128xbf16>, vector<8x128xbf16> -> vector<8x384xbf16>
    %c1 = arith.constant 1 : index
    %c0_29 = arith.constant 0 : index
    %c0_30 = arith.constant 0 : index
    %38 = vector.load %arg3[%c1, %c0_29, %c0_30] : memref<3x384x128xbf16, #tpu.memory_space<vmem>>, vector<1x384x128xbf16>
    %39 = vector.shape_cast %38 : vector<1x384x128xbf16> to vector<384x128xbf16>
    %cst_31 = arith.constant dense<0.000000e+00> : vector<8x128xf32>
    %40 = tpu.matmul %37, %39, %cst_31 {dimension_numbers = #tpu.dot_dimension_numbers<[1], [0], [0], [1], [0, 0, 1, 1], [], []>} : vector<8x384xbf16>, vector<384x128xbf16>, vector<8x128xf32> -> vector<8x128xf32>
    %c16_32 = arith.constant 16 : index
    %c0_33 = arith.constant 0 : index
    %41 = vector.load %arg6[%c16_32, %c0_33] : memref<40x128xf32, #tpu.memory_space<vmem>>, vector<8x128xf32>
    %42 = arith.addf %41, %40 : vector<8x128xf32>
    %cst_34 = arith.constant 0.000000e+00 : f32
    %43 = vector.broadcast %cst_34 : f32 to vector<8x128xf32>
    %44 = arith.cmpf oge, %42, %43 : vector<8x128xf32>
    %cst_35 = arith.constant 2.000000e-01 : f32
    %45 = vector.broadcast %cst_35 : f32 to vector<8x128xf32>
    %46 = arith.mulf %45, %42 : vector<8x128xf32>
    %47 = arith.select %44, %42, %46 : vector<8x128xi1>, vector<8x128xf32>
    %c16_36 = arith.constant 16 : index
    %c0_37 = arith.constant 0 : index
    %48 = vector.load %arg6[%c16_36, %c0_37] : memref<40x128xf32, #tpu.memory_space<vmem>>, vector<8x128xf32>
    tpu.vector_store %arg6[%c16_36, %c0_37], %47 {strides = array<i32>} : memref<40x128xf32, #tpu.memory_space<vmem>>, vector<8x128xf32>,
    %c3 = arith.constant 3 : index
    %c0_38 = arith.constant 0 : index
    %49 = vector.load %arg6[%c3, %c0_38] : memref<40x128xf32, #tpu.memory_space<vmem>>, vector<8x128xf32>
    %50 = arith.truncf %49 : vector<8x128xf32> to vector<8x128xbf16>
    %c12_39 = arith.constant 12 : index
    %c0_40 = arith.constant 0 : index
    %51 = vector.load %arg6[%c12_39, %c0_40] : memref<40x128xf32, #tpu.memory_space<vmem>>, vector<8x128xf32>
    %52 = arith.truncf %51 : vector<8x128xf32> to vector<8x128xbf16>
    %c21 = arith.constant 21 : index
    %c0_41 = arith.constant 0 : index
    %53 = vector.load %arg6[%c21, %c0_41] : memref<40x128xf32, #tpu.memory_space<vmem>>, vector<8x128xf32>
    %54 = arith.truncf %53 : vector<8x128xf32> to vector<8x128xbf16>
    %55 = tpu.concatenate %50, %52, %54 in 1 : vector<8x128xbf16>, vector<8x128xbf16>, vector<8x128xbf16> -> vector<8x384xbf16>
    %c2 = arith.constant 2 : index
    %c0_42 = arith.constant 0 : index
    %c0_43 = arith.constant 0 : index
    %56 = vector.load %arg3[%c2, %c0_42, %c0_43] : memref<3x384x128xbf16, #tpu.memory_space<vmem>>, vector<1x384x128xbf16>
    %57 = vector.shape_cast %56 : vector<1x384x128xbf16> to vector<384x128xbf16>
    %cst_44 = arith.constant dense<0.000000e+00> : vector<8x128xf32>
    %58 = tpu.matmul %55, %57, %cst_44 {dimension_numbers = #tpu.dot_dimension_numbers<[1], [0], [0], [1], [0, 0, 1, 1], [], []>} : vector<8x384xbf16>, vector<384x128xbf16>, vector<8x128xf32> -> vector<8x128xf32>
    %c16_45 = arith.constant 16 : index
    %c0_46 = arith.constant 0 : index
    %59 = vector.load %arg6[%c16_45, %c0_46] : memref<40x128xf32, #tpu.memory_space<vmem>>, vector<8x128xf32>
    %60 = arith.addf %59, %58 : vector<8x128xf32>
    %cst_47 = arith.constant 0.000000e+00 : f32
    %61 = vector.broadcast %cst_47 : f32 to vector<8x128xf32>
    %62 = arith.cmpf oge, %60, %61 : vector<8x128xf32>
    %cst_48 = arith.constant 2.000000e-01 : f32
    %63 = vector.broadcast %cst_48 : f32 to vector<8x128xf32>
    %64 = arith.mulf %63, %60 : vector<8x128xf32>
    %65 = arith.select %62, %60, %64 : vector<8x128xi1>, vector<8x128xf32>
    %c16_49 = arith.constant 16 : index
    %c0_50 = arith.constant 0 : index
    %66 = vector.load %arg6[%c16_49, %c0_50] : memref<40x128xf32, #tpu.memory_space<vmem>>, vector<8x128xf32>
    tpu.vector_store %arg6[%c16_49, %c0_50], %65 {strides = array<i32>} : memref<40x128xf32, #tpu.memory_space<vmem>>, vector<8x128xf32>,
    %c15_51 = arith.constant 15 : index
    %c0_52 = arith.constant 0 : index
    %67 = vector.load %arg6[%c15_51, %c0_52] : memref<40x128xf32, #tpu.memory_space<vmem>>, vector<8x128xf32>
    %68 = arith.truncf %67 : vector<8x128xf32> to vector<8x128xbf16>
    %c16_53 = arith.constant 16 : index
    %c0_54 = arith.constant 0 : index
    %69 = vector.load %arg6[%c16_53, %c0_54] : memref<40x128xf32, #tpu.memory_space<vmem>>, vector<8x128xf32>
    %70 = arith.truncf %69 : vector<8x128xf32> to vector<8x128xbf16>
    %c17_55 = arith.constant 17 : index
    %c0_56 = arith.constant 0 : index
    %71 = vector.load %arg6[%c17_55, %c0_56] : memref<40x128xf32, #tpu.memory_space<vmem>>, vector<8x128xf32>
    %72 = arith.truncf %71 : vector<8x128xf32> to vector<8x128xbf16>
    %73 = tpu.concatenate %68, %70, %72 in 1 : vector<8x128xbf16>, vector<8x128xbf16>, vector<8x128xbf16> -> vector<8x384xbf16>
    %c0_57 = arith.constant 0 : index
    %c0_58 = arith.constant 0 : index
    %74 = vector.load %arg4[%c0_57, %c0_58] : memref<384x256xbf16, #tpu.memory_space<vmem>>, vector<384x256xbf16>
    %cst_59 = arith.constant dense<0.000000e+00> : vector<8x256xf32>
    %75 = tpu.matmul %73, %74, %cst_59 {dimension_numbers = #tpu.dot_dimension_numbers<[1], [0], [0], [1], [0, 0, 1, 1], [], []>} : vector<8x384xbf16>, vector<384x256xbf16>, vector<8x256xf32> -> vector<8x256xf32>
    %cst_60 = arith.constant 0.000000e+00 : f32
    %76 = vector.broadcast %cst_60 : f32 to vector<8x256xf32>
    %77 = arith.cmpf oge, %75, %76 : vector<8x256xf32>
    %cst_61 = arith.constant 2.000000e-01 : f32
    %78 = vector.broadcast %cst_61 : f32 to vector<8x256xf32>
    %79 = arith.mulf %78, %75 : vector<8x256xf32>
    %80 = arith.select %77, %75, %79 : vector<8x256xi1>, vector<8x256xf32>
    %81 = arith.truncf %80 : vector<8x256xf32> to vector<8x256xbf16>
    %c0_62 = arith.constant 0 : index
    %c0_63 = arith.constant 0 : index
    %c0_64 = arith.constant 0 : index
    %82 = vector.load %arg5[%c0_62, %c0_63, %c0_64] : memref<1x8x256xbf16, #tpu.memory_space<vmem>>, vector<1x8x256xbf16>
    %83 = vector.shape_cast %82 : vector<1x8x256xbf16> to vector<8x256xbf16>
    %84 = vector.shape_cast %81 : vector<8x256xbf16> to vector<1x8x256xbf16>
    tpu.vector_store %arg5[%c0_62, %c0_63, %c0_64], %84 {strides = array<i32>} : memref<1x8x256xbf16, #tpu.memory_space<vmem>>, vector<1x8x256xbf16>,
    return
  }
  func.func @transform_0(%arg0: i32) -> (i32, i32, i32) {
    %c0_i32 = arith.constant 0 : i32
    %c0_i32_0 = arith.constant 0 : i32
    %c0_i32_1 = arith.constant 0 : i32
    return %arg0, %c0_i32, %c0_i32_0 : i32, i32, i32
  }
  func.func @transform_1(%arg0: i32) -> (i32, i32) {
    %c0_i32 = arith.constant 0 : i32
    %c0_i32_0 = arith.constant 0 : i32
    %c0_i32_1 = arith.constant 0 : i32
    return %c0_i32, %c0_i32_0 : i32, i32
  }
  func.func @transform_2(%arg0: i32) -> (i32, i32, i32) {
    %c0_i32 = arith.constant 0 : i32
    %c0_i32_0 = arith.constant 0 : i32
    %c0_i32_1 = arith.constant 0 : i32
    %c0_i32_2 = arith.constant 0 : i32
    return %c0_i32, %c0_i32_0, %c0_i32_1 : i32, i32, i32
  }
  func.func @transform_3(%arg0: i32) -> (i32, i32) {
    %c0_i32 = arith.constant 0 : i32
    %c0_i32_0 = arith.constant 0 : i32
    %c0_i32_1 = arith.constant 0 : i32
    return %c0_i32, %c0_i32_0 : i32, i32
  }
  func.func @transform_4(%arg0: i32) -> (i32, i32, i32) {
    %c0_i32 = arith.constant 0 : i32
    %c0_i32_0 = arith.constant 0 : i32
    %c0_i32_1 = arith.constant 0 : i32
    return %arg0, %c0_i32, %c0_i32_0 : i32, i32, i32
  }
}

</mosaic_0001>

<llo_original>
// kernel: forward.3
$region0: #{forward.3}
  #allocation0 [shape = 'u32[]', space=smem, size = 0x4, offset = 0x4, fixed_abs, tag = 'smem constant byte address 0x4 - core index']
  #allocation1 [shape = 'u32[144,128]{1,0:T(1,128)}', space=vmem, size = 0x12000, scoped, tag = 'internal scratch']
  #allocation2 [shape = 'f32[48,128]{1,0:T(8,128)}', space=vmem, size = 0x6000, scoped, tag = 'scratch operand']
  %s0 = inlined_call_operand.hbm [shape: bf16[1,16,128], index: 0, kind: input, shape index: {}]
  %s1 = inlined_call_operand.hbm [shape: bf16[3,384,128], index: 1, kind: input, shape index: {}]
  %s2 = inlined_call_operand.hbm [shape: bf16[4,896], index: 2, kind: input, shape index: {}]
  %s3 = inlined_call_operand.hbm [shape: f32[1,4,16], index: 3, kind: output, shape index: {}]
  %s4 = sld [smem:[#allocation0]]
  $region34: #{forward.3} parent=0
    _
  %s6 = ssub.s32 1, %s4
  %s7 = scalar_select 0, %s6, %s4
  $region1: #{forward.3} parent=0
    #allocation3 [shape = 'u8[4096]{0}', space=vmem, size = 0x1000, scoped, tag = 'input window, operand 0, single buffered']
    #allocation4 [shape = 's32[1]{0}', space=sflag, size = 0x4, scoped, tag = 'scoped memory for forward.3']
    #allocation5 [shape = 's32[1]{0}', space=sflag, size = 0x4, scoped, tag = 'scoped memory for forward.3']
    #allocation6 [shape = 'u8[294912]{0}', space=vmem, size = 0x48000, scoped, tag = 'input window, operand 1, single buffered']
    #allocation7 [shape = 's32[1]{0}', space=sflag, size = 0x4, scoped, tag = 'scoped memory for forward.3']
    #allocation8 [shape = 'u8[7168]{0}', space=vmem, size = 0x1c00, scoped, tag = 'input window, operand 2, single buffered']
    #allocation9 [shape = 'u8[2048]{0}', space=vmem, size = 0x800, scoped, tag = 'output window, operand 0, single buffered']
    %8 = vsyncpa [#allocation4], 0
    %9 = vsyncpa [#allocation7], 0
    %10 = vsyncpa [#allocation5], 0
    // Predicated region
    $region2: #{forward.3} parent=1 // pred_check
      _
    $region3: #{forward.3} parent=1 // pred_check_branch
      %12 = sbr.rel (0) target = $region5
    $region4: #{forward.3} parent=1 // pred_region
      %s14 = ssub.s32 128, 128
      %15 = vsyncadd [#allocation4], %s14
      %s16 = sshll.u32 [#allocation3], 4
      %s17 = int_to_ptr.vmem [resolvable:$true] %s16
      %22 = dma.hbm_to_vmem [thread:$0]  %s0, 128, %s17, [#allocation4], 64, 64, 4
    $region5: #{forward.3} parent=1 // pred_fallthru
      _
    // Predicated region
    $region6: #{forward.3} parent=1 // pred_check
      _
    $region7: #{forward.3} parent=1 // pred_check_branch
      %24 = sbr.rel (0) target = $region9
    $region8: #{forward.3} parent=1 // pred_region
      %s26 = ssub.s32 9216, 9216
      %27 = vsyncadd [#allocation7], %s26
      %s28 = sshll.u32 [#allocation6], 4
      %s29 = int_to_ptr.vmem [resolvable:$true] %s28
      %34 = dma.hbm_to_vmem [thread:$0]  %s1, 9216, %s29, [#allocation7], 64, 64, 4
    $region9: #{forward.3} parent=1 // pred_fallthru
      _
    // Predicated region
    $region10: #{forward.3} parent=1 // pred_check
      _
    $region11: #{forward.3} parent=1 // pred_check_branch
      %36 = sbr.rel (0) target = $region13
    $region12: #{forward.3} parent=1 // pred_region
      %s38 = ssub.s32 224, 224
      %39 = vsyncadd [#allocation7], %s38
      %s41 = sshll.u32 [#allocation8], 4
      %s42 = int_to_ptr.vmem [resolvable:$true] %s41
      %44 = dma.hbm_to_vmem [thread:$0]  %s2, 224, %s42, [#allocation7]
    $region13: #{forward.3} parent=1 // pred_fallthru
      _
    // Predicated region
    $region14: #{forward.3} parent=1 // pred_check
      _
    $region15: #{forward.3} parent=1 // pred_check_branch
      %46 = sbr.rel (0) target = $region17
    $region16: #{forward.3} parent=1 // pred_region
      %47 = dma.done [#allocation4], 128
    $region17: #{forward.3} parent=1 // pred_fallthru
      _
    // Predicated region
    $region18: #{forward.3} parent=1 // pred_check
      _
    $region19: #{forward.3} parent=1 // pred_check_branch
      %49 = sbr.rel (0) target = $region21
    $region20: #{forward.3} parent=1 // pred_region
      %50 = dma.done [#allocation7], 9216
    $region21: #{forward.3} parent=1 // pred_fallthru
      _
    // Predicated region
    $region22: #{forward.3} parent=1 // pred_check
      _
    $region23: #{forward.3} parent=1 // pred_check_branch
      %52 = sbr.rel (0) target = $region25
    $region24: #{forward.3} parent=1 // pred_region
      %53 = dma.done [#allocation7], 224
    $region25: #{forward.3} parent=1 // pred_fallthru
      _
    %v55 = vld [vmem:[#allocation3] sm:$0xf]
    %v56 = vld [vmem:[#allocation3 + $0x4] sm:$0xf]
    %v57 = vunpack.c.l.bf16 %v55
    %v58 = vunpack.c.l.bf16 %v56
    %59 = vst [vmem:[#allocation2] sm:$0xff] 0.0
    %60 = vst [vmem:[#allocation2 + $0x8] sm:$0xff] 0.0
    %61 = vst [vmem:[#allocation2 + $0x20] sm:$0xff] 0.0
    %62 = vst [vmem:[#allocation2 + $0x28] sm:$0xff] 0.0
    %63 = vst [vmem:[#allocation2 + $0x10] sm:$0xff] %v57
    %64 = vst [vmem:[#allocation2 + $0x18] sm:$0xff] %v58
    %v65 = vld [vmem:[#allocation2 + $0xf] sm:$0xff]
    %v66 = vld [vmem:[#allocation2 + $0x17] sm:$0xff]
    %v67 = vpack.c.bf16 %v66, %v65
    %v68 = vld [vmem:[#allocation2 + $0x10] sm:$0xff]
    %v69 = vld [vmem:[#allocation2 + $0x18] sm:$0xff]
    %v70 = vpack.c.bf16 %v69, %v68
    %v71 = vld [vmem:[#allocation2 + $0x11] sm:$0xff]
    %v72 = vld [vmem:[#allocation2 + $0x19] sm:$0xff]
    %v73 = vpack.c.bf16 %v72, %v71
    %v74 = vld [vmem:[#allocation6] sm:$0xf]
    %v75 = vld [vmem:[#allocation6 + $0x4] sm:$0xf]
    %v76 = vld [vmem:[#allocation6 + $0x8] sm:$0xf]
    %v77 = vld [vmem:[#allocation6 + $0xc] sm:$0xf]
    %v78 = vld [vmem:[#allocation6 + $0x10] sm:$0xf]
    %v79 = vld [vmem:[#allocation6 + $0x14] sm:$0xf]
    %v80 = vld [vmem:[#allocation6 + $0x18] sm:$0xf]
    %v81 = vld [vmem:[#allocation6 + $0x1c] sm:$0xf]
    %v82 = vld [vmem:[#allocation6 + $0x20] sm:$0xf]
    %v83 = vld [vmem:[#allocation6 + $0x24] sm:$0xf]
    %v84 = vld [vmem:[#allocation6 + $0x28] sm:$0xf]
    %v85 = vld [vmem:[#allocation6 + $0x2c] sm:$0xf]
    %v86 = vld [vmem:[#allocation6 + $0x30] sm:$0xf]
    %v87 = vld [vmem:[#allocation6 + $0x34] sm:$0xf]
    %v88 = vld [vmem:[#allocation6 + $0x38] sm:$0xf]
    %v89 = vld [vmem:[#allocation6 + $0x3c] sm:$0xf]
    %v90 = vld [vmem:[#allocation6 + $0x40] sm:$0xf]
    %v91 = vld [vmem:[#allocation6 + $0x44] sm:$0xf]
    %v92 = vld [vmem:[#allocation6 + $0x48] sm:$0xf]
    %v93 = vld [vmem:[#allocation6 + $0x4c] sm:$0xf]
    %v94 = vld [vmem:[#allocation6 + $0x50] sm:$0xf]
    %v95 = vld [vmem:[#allocation6 + $0x54] sm:$0xf]
    %v96 = vld [vmem:[#allocation6 + $0x58] sm:$0xf]
    %v97 = vld [vmem:[#allocation6 + $0x5c] sm:$0xf]
    %v98 = vld [vmem:[#allocation6 + $0x60] sm:$0xf]
    %v99 = vld [vmem:[#allocation6 + $0x64] sm:$0xf]
    %v100 = vld [vmem:[#allocation6 + $0x68] sm:$0xf]
    %v101 = vld [vmem:[#allocation6 + $0x6c] sm:$0xf]
    %v102 = vld [vmem:[#allocation6 + $0x70] sm:$0xf]
    %v103 = vld [vmem:[#allocation6 + $0x74] sm:$0xf]
    %v104 = vld [vmem:[#allocation6 + $0x78] sm:$0xf]
    %v105 = vld [vmem:[#allocation6 + $0x7c] sm:$0xf]
    %v106 = vld [vmem:[#allocation6 + $0x80] sm:$0xf]
    %v107 = vld [vmem:[#allocation6 + $0x84] sm:$0xf]
    %v108 = vld [vmem:[#allocation6 + $0x88] sm:$0xf]
    %v109 = vld [vmem:[#allocation6 + $0x8c] sm:$0xf]
    %v110 = vld [vmem:[#allocation6 + $0x90] sm:$0xf]
    %v111 = vld [vmem:[#allocation6 + $0x94] sm:$0xf]
    %v112 = vld [vmem:[#allocation6 + $0x98] sm:$0xf]
    %v113 = vld [vmem:[#allocation6 + $0x9c] sm:$0xf]
    %v114 = vld [vmem:[#allocation6 + $0xa0] sm:$0xf]
    %v115 = vld [vmem:[#allocation6 + $0xa4] sm:$0xf]
    %v116 = vld [vmem:[#allocation6 + $0xa8] sm:$0xf]
    %v117 = vld [vmem:[#allocation6 + $0xac] sm:$0xf]
    %v118 = vld [vmem:[#allocation6 + $0xb0] sm:$0xf]
    %v119 = vld [vmem:[#allocation6 + $0xb4] sm:$0xf]
    %v120 = vld [vmem:[#allocation6 + $0xb8] sm:$0xf]
    %v121 = vld [vmem:[#allocation6 + $0xbc] sm:$0xf]
    %v170 = vunpack.c.l.b16 %v74
    %v171 = vunpack.c.l.b16 %v75
    %v172 = vunpack.c.l.b16 %v76
    %v173 = vunpack.c.l.b16 %v77
    %v174 = vunpack.c.l.b16 %v78
    %v175 = vunpack.c.l.b16 %v79
    %v176 = vunpack.c.l.b16 %v80
    %v177 = vunpack.c.l.b16 %v81
    %v178 = vunpack.c.l.b16 %v82
    %v179 = vunpack.c.l.b16 %v83
    %v180 = vunpack.c.l.b16 %v84
    %v181 = vunpack.c.l.b16 %v85
    %v182 = vunpack.c.l.b16 %v86
    %v183 = vunpack.c.l.b16 %v87
    %v184 = vunpack.c.l.b16 %v88
    %v185 = vunpack.c.l.b16 %v89
    %v186 = vunpack.c.l.b16 %v90
    %v187 = vunpack.c.l.b16 %v91
    %v188 = vunpack.c.l.b16 %v92
    %v189 = vunpack.c.l.b16 %v93
    %v190 = vunpack.c.l.b16 %v94
    %v191 = vunpack.c.l.b16 %v95
    %v192 = vunpack.c.l.b16 %v96
    %v193 = vunpack.c.l.b16 %v97
    %v194 = vunpack.c.l.b16 %v98
    %v195 = vunpack.c.l.b16 %v99
    %v196 = vunpack.c.l.b16 %v100
    %v197 = vunpack.c.l.b16 %v101
    %v198 = vunpack.c.l.b16 %v102
    %v199 = vunpack.c.l.b16 %v103
    %v200 = vunpack.c.l.b16 %v104
    %v201 = vunpack.c.l.b16 %v105
    %v202 = vunpack.c.l.b16 %v106
    %v203 = vunpack.c.l.b16 %v107
    %v204 = vunpack.c.l.b16 %v108
    %v205 = vunpack.c.l.b16 %v109
    %v206 = vunpack.c.l.b16 %v110
    %v207 = vunpack.c.l.b16 %v111
    %v208 = vunpack.c.l.b16 %v112
    %v209 = vunpack.c.l.b16 %v113
    %v210 = vunpack.c.l.b16 %v114
    %v211 = vunpack.c.l.b16 %v115
    %v212 = vunpack.c.l.b16 %v116
    %v213 = vunpack.c.l.b16 %v117
    %v214 = vunpack.c.l.b16 %v118
    %v215 = vunpack.c.l.b16 %v119
    %v216 = vunpack.c.l.b16 %v120
    %v217 = vunpack.c.l.b16 %v121
    %v218 = vpack.c.b16 %v171, %v170
    %v219 = vpack.c.b16 %v173, %v172
    %v220 = vpack.c.b16 %v175, %v174
    %v221 = vpack.c.b16 %v177, %v176
    %v222 = vpack.c.b16 %v179, %v178
    %v223 = vpack.c.b16 %v181, %v180
    %v224 = vpack.c.b16 %v183, %v182
    %v225 = vpack.c.b16 %v185, %v184
    %v226 = vpack.c.b16 %v187, %v186
    %v227 = vpack.c.b16 %v189, %v188
    %v228 = vpack.c.b16 %v191, %v190
    %v229 = vpack.c.b16 %v193, %v192
    %v230 = vpack.c.b16 %v195, %v194
    %v231 = vpack.c.b16 %v197, %v196
    %v232 = vpack.c.b16 %v199, %v198
    %v233 = vpack.c.b16 %v201, %v200
    %v234 = vpack.c.b16 %v203, %v202
    %v235 = vpack.c.b16 %v205, %v204
    %v236 = vpack.c.b16 %v207, %v206
    %v237 = vpack.c.b16 %v209, %v208
    %v238 = vpack.c.b16 %v211, %v210
    %v239 = vpack.c.b16 %v213, %v212
    %v240 = vpack.c.b16 %v215, %v214
    %v241 = vpack.c.b16 %v217, %v216
    %266 = vmatprep.subr.bf16.mxu0 0
    %267 = vmatpush1.bf16.msra.mxu0 %v218
    %268 = vmatprep.subr.bf16.mxu0 0
    %269 = vmatpush1.bf16.msra.mxu0 %v219
    %270 = vmatprep.subr.bf16.mxu0 0
    %271 = vmatpush1.bf16.msra.mxu0 %v220
    %272 = vmatprep.subr.bf16.mxu0 0
    %273 = vmatpush1.bf16.msra.mxu0 %v221
    %274 = vmatprep.subr.bf16.mxu0 0
    %275 = vmatpush1.bf16.msra.mxu0 %v222
    %276 = vmatprep.subr.bf16.mxu0 0
    %277 = vmatpush1.bf16.msra.mxu0 %v223
    %278 = vmatprep.subr.bf16.mxu0 0
    %279 = vmatpush1.bf16.msra.mxu0 %v224
    %280 = vmatprep.subr.bf16.mxu0 0
    %281 = vmatpush1.bf16.msra.mxu0 %v225
    %282 = vmatprep.subr.bf16.mxu0 0
    %283 = vmatpush1.bf16.msra.mxu0 %v226
    %284 = vmatprep.subr.bf16.mxu0 0
    %285 = vmatpush1.bf16.msra.mxu0 %v227
    %286 = vmatprep.subr.bf16.mxu0 0
    %287 = vmatpush1.bf16.msra.mxu0 %v228
    %288 = vmatprep.subr.bf16.mxu0 0
    %289 = vmatpush1.bf16.msra.mxu0 %v229
    %290 = vmatprep.subr.bf16.mxu0 0
    %291 = vmatpush1.bf16.msra.mxu0 %v230
    %292 = vmatprep.subr.bf16.mxu0 0
    %293 = vmatpush1.bf16.msra.mxu0 %v231
    %294 = vmatprep.subr.bf16.mxu0 0
    %295 = vmatpush1.bf16.msra.mxu0 %v232
    %296 = vmatprep.subr.bf16.mxu0 0
    %297 = vmatpush1.bf16.msra.mxu0 %v233
    %298 = vmatprep.mubr.bf16.mxu0 %v70
    %299 = vmatmul.mubr.bf16.gmra.mrb[0].mxu0 %v67
    %v300 = vpop.f32.mrb[0].mxu0
    %v301 = vadd.f32 0.0, %v300
    %v302 = vpop.f32.mrb[0].mxu0
    %v303 = vpop.f32.mrb[0].mxu0
    %v304 = vadd.f32 0.0, %v303
    %v305 = vpop.f32.mrb[0].mxu0
    %306 = vdwg.mxu0
    %307 = vmatprep.subr.bf16.mxu0 0
    %308 = vmatpush1.bf16.msra.mxu0 %v234
    %309 = vmatprep.subr.bf16.mxu0 0
    %310 = vmatpush1.bf16.msra.mxu0 %v235
    %311 = vmatprep.subr.bf16.mxu0 0
    %312 = vmatpush1.bf16.msra.mxu0 %v236
    %313 = vmatprep.subr.bf16.mxu0 0
    %314 = vmatpush1.bf16.msra.mxu0 %v237
    %315 = vmatprep.subr.bf16.mxu0 0
    %316 = vmatpush1.bf16.msra.mxu0 %v238
    %317 = vmatprep.subr.bf16.mxu0 0
    %318 = vmatpush1.bf16.msra.mxu0 %v239
    %319 = vmatprep.subr.bf16.mxu0 0
    %320 = vmatpush1.bf16.msra.mxu0 %v240
    %321 = vmatprep.subr.bf16.mxu0 0
    %322 = vmatpush1.bf16.msra.mxu0 %v241
    %323 = vmatprep.subr.bf16.mxu0 0
    %324 = vmatpush1.bf16.msra.mxu0 0
    %325 = vmatprep.subr.bf16.mxu0 0
    %326 = vmatpush1.bf16.msra.mxu0 0
    %327 = vmatprep.subr.bf16.mxu0 0
    %328 = vmatpush1.bf16.msra.mxu0 0
    %329 = vmatprep.subr.bf16.mxu0 0
    %330 = vmatpush1.bf16.msra.mxu0 0
    %331 = vmatprep.subr.bf16.mxu0 0
    %332 = vmatpush1.bf16.msra.mxu0 0
    %333 = vmatprep.subr.bf16.mxu0 0
    %334 = vmatpush1.bf16.msra.mxu0 0
    %335 = vmatprep.subr.bf16.mxu0 0
    %336 = vmatpush1.bf16.msra.mxu0 0
    %337 = vmatprep.subr.bf16.mxu0 0
    %338 = vmatpush1.bf16.msra.mxu0 0
    %339 = vmatprep.mubr.bf16.mxu0 0
    %340 = vmatmul.mubr.bf16.gmra.mrb[0].mxu0 %v73
    %v341 = vpop.f32.mrb[0].mxu0
    %v342 = vadd.f32 %v301, %v341
    %v343 = vpop.f32.mrb[0].mxu0
    %v344 = vpop.f32.mrb[0].mxu0
    %v345 = vadd.f32 %v304, %v344
    %v346 = vpop.f32.mrb[0].mxu0
    %347 = vdwg.mxu0
    %v348 = vadd.f32 %v68, %v342
    %v349 = vadd.f32 %v69, %v345
    %vm350 = vcmp.ge.f32.partialorder %v348, 0.0
    %vm351 = vcmp.ge.f32.partialorder %v349, 0.0
    %v352 = vmul.f32 %v348, 0.2
    %v353 = vmul.f32 %v349, 0.2
    %v354 = vsel %vm350, %v348, %v352
    %v355 = vsel %vm351, %v349, %v353
    %356 = vst [vmem:[#allocation2 + $0x10] sm:$0xff] %v354
    %357 = vst [vmem:[#allocation2 + $0x18] sm:$0xff] %v355
    %v358 = vld [vmem:[#allocation2 + $0xc] sm:$0xff]
    %v359 = vld [vmem:[#allocation2 + $0x14] sm:$0xff]
    %v360 = vpack.c.bf16 %v359, %v358
    %v361 = vld [vmem:[#allocation2 + $0xf] sm:$0xff]
    %v362 = vld [vmem:[#allocation2 + $0x17] sm:$0xff]
    %v363 = vpack.c.bf16 %v362, %v361
    %v364 = vld [vmem:[#allocation2 + $0x12] sm:$0xff]
    %v365 = vld [vmem:[#allocation2 + $0x1a] sm:$0xff]
    %v366 = vpack.c.bf16 %v365, %v364
    %s367 = scalar_lea.vmem [#allocation6], 192
    %v368 = vld [vmem:[%s367] sm:$0xf]
    %v369 = vld [vmem:[%s367 + $0x4] sm:$0xf]
    %v370 = vld [vmem:[%s367 + $0x8] sm:$0xf]
    %v371 = vld [vmem:[%s367 + $0xc] sm:$0xf]
    %v372 = vld [vmem:[%s367 + $0x10] sm:$0xf]
    %v373 = vld [vmem:[%s367 + $0x14] sm:$0xf]
    %v374 = vld [vmem:[%s367 + $0x18] sm:$0xf]
    %v375 = vld [vmem:[%s367 + $0x1c] sm:$0xf]
    %v376 = vld [vmem:[%s367 + $0x20] sm:$0xf]
    %v377 = vld [vmem:[%s367 + $0x24] sm:$0xf]
    %v378 = vld [vmem:[%s367 + $0x28] sm:$0xf]
    %v379 = vld [vmem:[%s367 + $0x2c] sm:$0xf]
    %v380 = vld [vmem:[%s367 + $0x30] sm:$0xf]
    %v381 = vld [vmem:[%s367 + $0x34] sm:$0xf]
    %v382 = vld [vmem:[%s367 + $0x38] sm:$0xf]
    %v383 = vld [vmem:[%s367 + $0x3c] sm:$0xf]
    %v384 = vld [vmem:[%s367 + $0x40] sm:$0xf]
    %v385 = vld [vmem:[%s367 + $0x44] sm:$0xf]
    %v386 = vld [vmem:[%s367 + $0x48] sm:$0xf]
    %v387 = vld [vmem:[%s367 + $0x4c] sm:$0xf]
    %v388 = vld [vmem:[%s367 + $0x50] sm:$0xf]
    %v389 = vld [vmem:[%s367 + $0x54] sm:$0xf]
    %v390 = vld [vmem:[%s367 + $0x58] sm:$0xf]
    %v391 = vld [vmem:[%s367 + $0x5c] sm:$0xf]
    %v392 = vld [vmem:[%s367 + $0x60] sm:$0xf]
    %v393 = vld [vmem:[%s367 + $0x64] sm:$0xf]
    %v394 = vld [vmem:[%s367 + $0x68] sm:$0xf]
    %v395 = vld [vmem:[%s367 + $0x6c] sm:$0xf]
    %v396 = vld [vmem:[%s367 + $0x70] sm:$0xf]
    %v397 = vld [vmem:[%s367 + $0x74] sm:$0xf]
    %v398 = vld [vmem:[%s367 + $0x78] sm:$0xf]
    %v399 = vld [vmem:[%s367 + $0x7c] sm:$0xf]
    %v400 = vld [vmem:[%s367 + $0x80] sm:$0xf]
    %v401 = vld [vmem:[%s367 + $0x84] sm:$0xf]
    %v402 = vld [vmem:[%s367 + $0x88] sm:$0xf]
    %v403 = vld [vmem:[%s367 + $0x8c] sm:$0xf]
    %v404 = vld [vmem:[%s367 + $0x90] sm:$0xf]
    %v405 = vld [vmem:[%s367 + $0x94] sm:$0xf]
    %v406 = vld [vmem:[%s367 + $0x98] sm:$0xf]
    %v407 = vld [vmem:[%s367 + $0x9c] sm:$0xf]
    %v408 = vld [vmem:[%s367 + $0xa0] sm:$0xf]
    %v409 = vld [vmem:[%s367 + $0xa4] sm:$0xf]
    %v410 = vld [vmem:[%s367 + $0xa8] sm:$0xf]
    %v411 = vld [vmem:[%s367 + $0xac] sm:$0xf]
    %v412 = vld [vmem:[%s367 + $0xb0] sm:$0xf]
    %v413 = vld [vmem:[%s367 + $0xb4] sm:$0xf]
    %v414 = vld [vmem:[%s367 + $0xb8] sm:$0xf]
    %v415 = vld [vmem:[%s367 + $0xbc] sm:$0xf]
    %v464 = vunpack.c.l.b16 %v368
    %v465 = vunpack.c.l.b16 %v369
    %v466 = vunpack.c.l.b16 %v370
    %v467 = vunpack.c.l.b16 %v371
    %v468 = vunpack.c.l.b16 %v372
    %v469 = vunpack.c.l.b16 %v373
    %v470 = vunpack.c.l.b16 %v374
    %v471 = vunpack.c.l.b16 %v375
    %v472 = vunpack.c.l.b16 %v376
    %v473 = vunpack.c.l.b16 %v377
    %v474 = vunpack.c.l.b16 %v378
    %v475 = vunpack.c.l.b16 %v379
    %v476 = vunpack.c.l.b16 %v380
    %v477 = vunpack.c.l.b16 %v381
    %v478 = vunpack.c.l.b16 %v382
    %v479 = vunpack.c.l.b16 %v383
    %v480 = vunpack.c.l.b16 %v384
    %v481 = vunpack.c.l.b16 %v385
    %v482 = vunpack.c.l.b16 %v386
    %v483 = vunpack.c.l.b16 %v387
    %v484 = vunpack.c.l.b16 %v388
    %v485 = vunpack.c.l.b16 %v389
    %v486 = vunpack.c.l.b16 %v390
    %v487 = vunpack.c.l.b16 %v391
    %v488 = vunpack.c.l.b16 %v392
    %v489 = vunpack.c.l.b16 %v393
    %v490 = vunpack.c.l.b16 %v394
    %v491 = vunpack.c.l.b16 %v395
    %v492 = vunpack.c.l.b16 %v396
    %v493 = vunpack.c.l.b16 %v397
    %v494 = vunpack.c.l.b16 %v398
    %v495 = vunpack.c.l.b16 %v399
    %v496 = vunpack.c.l.b16 %v400
    %v497 = vunpack.c.l.b16 %v401
    %v498 = vunpack.c.l.b16 %v402
    %v499 = vunpack.c.l.b16 %v403
    %v500 = vunpack.c.l.b16 %v404
    %v501 = vunpack.c.l.b16 %v405
    %v502 = vunpack.c.l.b16 %v406
    %v503 = vunpack.c.l.b16 %v407
    %v504 = vunpack.c.l.b16 %v408
    %v505 = vunpack.c.l.b16 %v409
    %v506 = vunpack.c.l.b16 %v410
    %v507 = vunpack.c.l.b16 %v411
    %v508 = vunpack.c.l.b16 %v412
    %v509 = vunpack.c.l.b16 %v413
    %v510 = vunpack.c.l.b16 %v414
    %v511 = vunpack.c.l.b16 %v415
    %v512 = vpack.c.b16 %v465, %v464
    %v513 = vpack.c.b16 %v467, %v466
    %v514 = vpack.c.b16 %v469, %v468
    %v515 = vpack.c.b16 %v471, %v470
    %v516 = vpack.c.b16 %v473, %v472
    %v517 = vpack.c.b16 %v475, %v474
    %v518 = vpack.c.b16 %v477, %v476
    %v519 = vpack.c.b16 %v479, %v478
    %v520 = vpack.c.b16 %v481, %v480
    %v521 = vpack.c.b16 %v483, %v482
    %v522 = vpack.c.b16 %v485, %v484
    %v523 = vpack.c.b16 %v487, %v486
    %v524 = vpack.c.b16 %v489, %v488
    %v525 = vpack.c.b16 %v491, %v490
    %v526 = vpack.c.b16 %v493, %v492
    %v527 = vpack.c.b16 %v495, %v494
    %v528 = vpack.c.b16 %v497, %v496
    %v529 = vpack.c.b16 %v499, %v498
    %v530 = vpack.c.b16 %v501, %v500
    %v531 = vpack.c.b16 %v503, %v502
    %v532 = vpack.c.b16 %v505, %v504
    %v533 = vpack.c.b16 %v507, %v506
    %v534 = vpack.c.b16 %v509, %v508
    %v535 = vpack.c.b16 %v511, %v510
    %560 = vmatprep.subr.bf16.mxu0 0
    %561 = vmatpush1.bf16.msra.mxu0 %v512
    %562 = vmatprep.subr.bf16.mxu0 0
    %563 = vmatpush1.bf16.msra.mxu0 %v513
    %564 = vmatprep.subr.bf16.mxu0 0
    %565 = vmatpush1.bf16.msra.mxu0 %v514
    %566 = vmatprep.subr.bf16.mxu0 0
    %567 = vmatpush1.bf16.msra.mxu0 %v515
    %568 = vmatprep.subr.bf16.mxu0 0
    %569 = vmatpush1.bf16.msra.mxu0 %v516
    %570 = vmatprep.subr.bf16.mxu0 0
    %571 = vmatpush1.bf16.msra.mxu0 %v517
    %572 = vmatprep.subr.bf16.mxu0 0
    %573 = vmatpush1.bf16.msra.mxu0 %v518
    %574 = vmatprep.subr.bf16.mxu0 0
    %575 = vmatpush1.bf16.msra.mxu0 %v519
    %576 = vmatprep.subr.bf16.mxu0 0
    %577 = vmatpush1.bf16.msra.mxu0 %v520
    %578 = vmatprep.subr.bf16.mxu0 0
    %579 = vmatpush1.bf16.msra.mxu0 %v521
    %580 = vmatprep.subr.bf16.mxu0 0
    %581 = vmatpush1.bf16.msra.mxu0 %v522
    %582 = vmatprep.subr.bf16.mxu0 0
    %583 = vmatpush1.bf16.msra.mxu0 %v523
    %584 = vmatprep.subr.bf16.mxu0 0
    %585 = vmatpush1.bf16.msra.mxu0 %v524
    %586 = vmatprep.subr.bf16.mxu0 0
    %587 = vmatpush1.bf16.msra.mxu0 %v525
    %588 = vmatprep.subr.bf16.mxu0 0
    %589 = vmatpush1.bf16.msra.mxu0 %v526
    %590 = vmatprep.subr.bf16.mxu0 0
    %591 = vmatpush1.bf16.msra.mxu0 %v527
    %592 = vmatprep.mubr.bf16.mxu0 %v363
    %593 = vmatmul.mubr.bf16.gmra.mrb[0].mxu0 %v360
    %v594 = vpop.f32.mrb[0].mxu0
    %v595 = vadd.f32 0.0, %v594
    %v596 = vpop.f32.mrb[0].mxu0
    %v597 = vpop.f32.mrb[0].mxu0
    %v598 = vadd.f32 0.0, %v597
    %v599 = vpop.f32.mrb[0].mxu0
    %600 = vdwg.mxu0
    %601 = vmatprep.subr.bf16.mxu0 0
    %602 = vmatpush1.bf16.msra.mxu0 %v528
    %603 = vmatprep.subr.bf16.mxu0 0
    %604 = vmatpush1.bf16.msra.mxu0 %v529
    %605 = vmatprep.subr.bf16.mxu0 0
    %606 = vmatpush1.bf16.msra.mxu0 %v530
    %607 = vmatprep.subr.bf16.mxu0 0
    %608 = vmatpush1.bf16.msra.mxu0 %v531
    %609 = vmatprep.subr.bf16.mxu0 0
    %610 = vmatpush1.bf16.msra.mxu0 %v532
    %611 = vmatprep.subr.bf16.mxu0 0
    %612 = vmatpush1.bf16.msra.mxu0 %v533
    %613 = vmatprep.subr.bf16.mxu0 0
    %614 = vmatpush1.bf16.msra.mxu0 %v534
    %615 = vmatprep.subr.bf16.mxu0 0
    %616 = vmatpush1.bf16.msra.mxu0 %v535
    %617 = vmatprep.subr.bf16.mxu0 0
    %618 = vmatpush1.bf16.msra.mxu0 0
    %619 = vmatprep.subr.bf16.mxu0 0
    %620 = vmatpush1.bf16.msra.mxu0 0
    %621 = vmatprep.subr.bf16.mxu0 0
    %622 = vmatpush1.bf16.msra.mxu0 0
    %623 = vmatprep.subr.bf16.mxu0 0
    %624 = vmatpush1.bf16.msra.mxu0 0
    %625 = vmatprep.subr.bf16.mxu0 0
    %626 = vmatpush1.bf16.msra.mxu0 0
    %627 = vmatprep.subr.bf16.mxu0 0
    %628 = vmatpush1.bf16.msra.mxu0 0
    %629 = vmatprep.subr.bf16.mxu0 0
    %630 = vmatpush1.bf16.msra.mxu0 0
    %631 = vmatprep.subr.bf16.mxu0 0
    %632 = vmatpush1.bf16.msra.mxu0 0
    %633 = vmatprep.mubr.bf16.mxu0 0
    %634 = vmatmul.mubr.bf16.gmra.mrb[0].mxu0 %v366
    %v635 = vpop.f32.mrb[0].mxu0
    %v636 = vadd.f32 %v595, %v635
    %v637 = vpop.f32.mrb[0].mxu0
    %v638 = vpop.f32.mrb[0].mxu0
    %v639 = vadd.f32 %v598, %v638
    %v640 = vpop.f32.mrb[0].mxu0
    %641 = vdwg.mxu0
    %v642 = vld [vmem:[#allocation2 + $0x10] sm:$0xff]
    %v643 = vld [vmem:[#allocation2 + $0x18] sm:$0xff]
    %v644 = vadd.f32 %v642, %v636
    %v645 = vadd.f32 %v643, %v639
    %vm646 = vcmp.ge.f32.partialorder %v644, 0.0
    %vm647 = vcmp.ge.f32.partialorder %v645, 0.0
    %v648 = vmul.f32 %v644, 0.2
    %v649 = vmul.f32 %v645, 0.2
    %v650 = vsel %vm646, %v644, %v648
    %v651 = vsel %vm647, %v645, %v649
    %652 = vst [vmem:[#allocation2 + $0x10] sm:$0xff] %v650
    %653 = vst [vmem:[#allocation2 + $0x18] sm:$0xff] %v651
    %v654 = vld [vmem:[#allocation2 + $0x3] sm:$0xff]
    %v655 = vld [vmem:[#allocation2 + $0xb] sm:$0xff]
    %v656 = vpack.c.bf16 %v655, %v654
    %v657 = vld [vmem:[#allocation2 + $0xc] sm:$0xff]
    %v658 = vld [vmem:[#allocation2 + $0x14] sm:$0xff]
    %v659 = vpack.c.bf16 %v658, %v657
    %v660 = vld [vmem:[#allocation2 + $0x15] sm:$0xff]
    %v661 = vld [vmem:[#allocation2 + $0x1d] sm:$0xff]
    %v662 = vpack.c.bf16 %v661, %v660
    %s663 = scalar_lea.vmem [#allocation6], 384
    %v664 = vld [vmem:[%s663] sm:$0xf]
    %v665 = vld [vmem:[%s663 + $0x4] sm:$0xf]
    %v666 = vld [vmem:[%s663 + $0x8] sm:$0xf]
    %v667 = vld [vmem:[%s663 + $0xc] sm:$0xf]
    %v668 = vld [vmem:[%s663 + $0x10] sm:$0xf]
    %v669 = vld [vmem:[%s663 + $0x14] sm:$0xf]
    %v670 = vld [vmem:[%s663 + $0x18] sm:$0xf]
    %v671 = vld [vmem:[%s663 + $0x1c] sm:$0xf]
    %v672 = vld [vmem:[%s663 + $0x20] sm:$0xf]
    %v673 = vld [vmem:[%s663 + $0x24] sm:$0xf]
    %v674 = vld [vmem:[%s663 + $0x28] sm:$0xf]
    %v675 = vld [vmem:[%s663 + $0x2c] sm:$0xf]
    %v676 = vld [vmem:[%s663 + $0x30] sm:$0xf]
    %v677 = vld [vmem:[%s663 + $0x34] sm:$0xf]
    %v678 = vld [vmem:[%s663 + $0x38] sm:$0xf]
    %v679 = vld [vmem:[%s663 + $0x3c] sm:$0xf]
    %v680 = vld [vmem:[%s663 + $0x40] sm:$0xf]
    %v681 = vld [vmem:[%s663 + $0x44] sm:$0xf]
    %v682 = vld [vmem:[%s663 + $0x48] sm:$0xf]
    %v683 = vld [vmem:[%s663 + $0x4c] sm:$0xf]
    %v684 = vld [vmem:[%s663 + $0x50] sm:$0xf]
    %v685 = vld [vmem:[%s663 + $0x54] sm:$0xf]
    %v686 = vld [vmem:[%s663 + $0x58] sm:$0xf]
    %v687 = vld [vmem:[%s663 + $0x5c] sm:$0xf]
    %v688 = vld [vmem:[%s663 + $0x60] sm:$0xf]
    %v689 = vld [vmem:[%s663 + $0x64] sm:$0xf]
    %v690 = vld [vmem:[%s663 + $0x68] sm:$0xf]
    %v691 = vld [vmem:[%s663 + $0x6c] sm:$0xf]
    %v692 = vld [vmem:[%s663 + $0x70] sm:$0xf]
    %v693 = vld [vmem:[%s663 + $0x74] sm:$0xf]
    %v694 = vld [vmem:[%s663 + $0x78] sm:$0xf]
    %v695 = vld [vmem:[%s663 + $0x7c] sm:$0xf]
    %v696 = vld [vmem:[%s663 + $0x80] sm:$0xf]
    %v697 = vld [vmem:[%s663 + $0x84] sm:$0xf]
    %v698 = vld [vmem:[%s663 + $0x88] sm:$0xf]
    %v699 = vld [vmem:[%s663 + $0x8c] sm:$0xf]
    %v700 = vld [vmem:[%s663 + $0x90] sm:$0xf]
    %v701 = vld [vmem:[%s663 + $0x94] sm:$0xf]
    %v702 = vld [vmem:[%s663 + $0x98] sm:$0xf]
    %v703 = vld [vmem:[%s663 + $0x9c] sm:$0xf]
    %v704 = vld [vmem:[%s663 + $0xa0] sm:$0xf]
    %v705 = vld [vmem:[%s663 + $0xa4] sm:$0xf]
    %v706 = vld [vmem:[%s663 + $0xa8] sm:$0xf]
    %v707 = vld [vmem:[%s663 + $0xac] sm:$0xf]
    %v708 = vld [vmem:[%s663 + $0xb0] sm:$0xf]
    %v709 = vld [vmem:[%s663 + $0xb4] sm:$0xf]
    %v710 = vld [vmem:[%s663 + $0xb8] sm:$0xf]
    %v711 = vld [vmem:[%s663 + $0xbc] sm:$0xf]
    %v760 = vunpack.c.l.b16 %v664
    %v761 = vunpack.c.l.b16 %v665
    %v762 = vunpack.c.l.b16 %v666
    %v763 = vunpack.c.l.b16 %v667
    %v764 = vunpack.c.l.b16 %v668
    %v765 = vunpack.c.l.b16 %v669
    %v766 = vunpack.c.l.b16 %v670
    %v767 = vunpack.c.l.b16 %v671
    %v768 = vunpack.c.l.b16 %v672
    %v769 = vunpack.c.l.b16 %v673
    %v770 = vunpack.c.l.b16 %v674
    %v771 = vunpack.c.l.b16 %v675
    %v772 = vunpack.c.l.b16 %v676
    %v773 = vunpack.c.l.b16 %v677
    %v774 = vunpack.c.l.b16 %v678
    %v775 = vunpack.c.l.b16 %v679
    %v776 = vunpack.c.l.b16 %v680
    %v777 = vunpack.c.l.b16 %v681
    %v778 = vunpack.c.l.b16 %v682
    %v779 = vunpack.c.l.b16 %v683
    %v780 = vunpack.c.l.b16 %v684
    %v781 = vunpack.c.l.b16 %v685
    %v782 = vunpack.c.l.b16 %v686
    %v783 = vunpack.c.l.b16 %v687
    %v784 = vunpack.c.l.b16 %v688
    %v785 = vunpack.c.l.b16 %v689
    %v786 = vunpack.c.l.b16 %v690
    %v787 = vunpack.c.l.b16 %v691
    %v788 = vunpack.c.l.b16 %v692
    %v789 = vunpack.c.l.b16 %v693
    %v790 = vunpack.c.l.b16 %v694
    %v791 = vunpack.c.l.b16 %v695
    %v792 = vunpack.c.l.b16 %v696
    %v793 = vunpack.c.l.b16 %v697
    %v794 = vunpack.c.l.b16 %v698
    %v795 = vunpack.c.l.b16 %v699
    %v796 = vunpack.c.l.b16 %v700
    %v797 = vunpack.c.l.b16 %v701
    %v798 = vunpack.c.l.b16 %v702
    %v799 = vunpack.c.l.b16 %v703
    %v800 = vunpack.c.l.b16 %v704
    %v801 = vunpack.c.l.b16 %v705
    %v802 = vunpack.c.l.b16 %v706
    %v803 = vunpack.c.l.b16 %v707
    %v804 = vunpack.c.l.b16 %v708
    %v805 = vunpack.c.l.b16 %v709
    %v806 = vunpack.c.l.b16 %v710
    %v807 = vunpack.c.l.b16 %v711
    %v808 = vpack.c.b16 %v761, %v760
    %v809 = vpack.c.b16 %v763, %v762
    %v810 = vpack.c.b16 %v765, %v764
    %v811 = vpack.c.b16 %v767, %v766
    %v812 = vpack.c.b16 %v769, %v768
    %v813 = vpack.c.b16 %v771, %v770
    %v814 = vpack.c.b16 %v773, %v772
    %v815 = vpack.c.b16 %v775, %v774
    %v816 = vpack.c.b16 %v777, %v776
    %v817 = vpack.c.b16 %v779, %v778
    %v818 = vpack.c.b16 %v781, %v780
    %v819 = vpack.c.b16 %v783, %v782
    %v820 = vpack.c.b16 %v785, %v784
    %v821 = vpack.c.b16 %v787, %v786
    %v822 = vpack.c.b16 %v789, %v788
    %v823 = vpack.c.b16 %v791, %v790
    %v824 = vpack.c.b16 %v793, %v792
    %v825 = vpack.c.b16 %v795, %v794
    %v826 = vpack.c.b16 %v797, %v796
    %v827 = vpack.c.b16 %v799, %v798
    %v828 = vpack.c.b16 %v801, %v800
    %v829 = vpack.c.b16 %v803, %v802
    %v830 = vpack.c.b16 %v805, %v804
    %v831 = vpack.c.b16 %v807, %v806
    %856 = vmatprep.subr.bf16.mxu0 0
    %857 = vmatpush1.bf16.msra.mxu0 %v808
    %858 = vmatprep.subr.bf16.mxu0 0
    %859 = vmatpush1.bf16.msra.mxu0 %v809
    %860 = vmatprep.subr.bf16.mxu0 0
    %861 = vmatpush1.bf16.msra.mxu0 %v810
    %862 = vmatprep.subr.bf16.mxu0 0
    %863 = vmatpush1.bf16.msra.mxu0 %v811
    %864 = vmatprep.subr.bf16.mxu0 0
    %865 = vmatpush1.bf16.msra.mxu0 %v812
    %866 = vmatprep.subr.bf16.mxu0 0
    %867 = vmatpush1.bf16.msra.mxu0 %v813
    %868 = vmatprep.subr.bf16.mxu0 0
    %869 = vmatpush1.bf16.msra.mxu0 %v814
    %870 = vmatprep.subr.bf16.mxu0 0
    %871 = vmatpush1.bf16.msra.mxu0 %v815
    %872 = vmatprep.subr.bf16.mxu0 0
    %873 = vmatpush1.bf16.msra.mxu0 %v816
    %874 = vmatprep.subr.bf16.mxu0 0
    %875 = vmatpush1.bf16.msra.mxu0 %v817
    %876 = vmatprep.subr.bf16.mxu0 0
    %877 = vmatpush1.bf16.msra.mxu0 %v818
    %878 = vmatprep.subr.bf16.mxu0 0
    %879 = vmatpush1.bf16.msra.mxu0 %v819
    %880 = vmatprep.subr.bf16.mxu0 0
    %881 = vmatpush1.bf16.msra.mxu0 %v820
    %882 = vmatprep.subr.bf16.mxu0 0
    %883 = vmatpush1.bf16.msra.mxu0 %v821
    %884 = vmatprep.subr.bf16.mxu0 0
    %885 = vmatpush1.bf16.msra.mxu0 %v822
    %886 = vmatprep.subr.bf16.mxu0 0
    %887 = vmatpush1.bf16.msra.mxu0 %v823
    %888 = vmatprep.mubr.bf16.mxu0 %v659
    %889 = vmatmul.mubr.bf16.gmra.mrb[0].mxu0 %v656
    %v890 = vpop.f32.mrb[0].mxu0
    %v891 = vadd.f32 0.0, %v890
    %v892 = vpop.f32.mrb[0].mxu0
    %v893 = vpop.f32.mrb[0].mxu0
    %v894 = vadd.f32 0.0, %v893
    %v895 = vpop.f32.mrb[0].mxu0
    %896 = vdwg.mxu0
    %897 = vmatprep.subr.bf16.mxu0 0
    %898 = vmatpush1.bf16.msra.mxu0 %v824
    %899 = vmatprep.subr.bf16.mxu0 0
    %900 = vmatpush1.bf16.msra.mxu0 %v825
    %901 = vmatprep.subr.bf16.mxu0 0
    %902 = vmatpush1.bf16.msra.mxu0 %v826
    %903 = vmatprep.subr.bf16.mxu0 0
    %904 = vmatpush1.bf16.msra.mxu0 %v827
    %905 = vmatprep.subr.bf16.mxu0 0
    %906 = vmatpush1.bf16.msra.mxu0 %v828
    %907 = vmatprep.subr.bf16.mxu0 0
    %908 = vmatpush1.bf16.msra.mxu0 %v829
    %909 = vmatprep.subr.bf16.mxu0 0
    %910 = vmatpush1.bf16.msra.mxu0 %v830
    %911 = vmatprep.subr.bf16.mxu0 0
    %912 = vmatpush1.bf16.msra.mxu0 %v831
    %913 = vmatprep.subr.bf16.mxu0 0
    %914 = vmatpush1.bf16.msra.mxu0 0
    %915 = vmatprep.subr.bf16.mxu0 0
    %916 = vmatpush1.bf16.msra.mxu0 0
    %917 = vmatprep.subr.bf16.mxu0 0
    %918 = vmatpush1.bf16.msra.mxu0 0
    %919 = vmatprep.subr.bf16.mxu0 0
    %920 = vmatpush1.bf16.msra.mxu0 0
    %921 = vmatprep.subr.bf16.mxu0 0
    %922 = vmatpush1.bf16.msra.mxu0 0
    %923 = vmatprep.subr.bf16.mxu0 0
    %924 = vmatpush1.bf16.msra.mxu0 0
    %925 = vmatprep.subr.bf16.mxu0 0
    %926 = vmatpush1.bf16.msra.mxu0 0
    %927 = vmatprep.subr.bf16.mxu0 0
    %928 = vmatpush1.bf16.msra.mxu0 0
    %929 = vmatprep.mubr.bf16.mxu0 0
    %930 = vmatmul.mubr.bf16.gmra.mrb[0].mxu0 %v662
    %v931 = vpop.f32.mrb[0].mxu0
    %v932 = vadd.f32 %v891, %v931
    %v933 = vpop.f32.mrb[0].mxu0
    %v934 = vpop.f32.mrb[0].mxu0
    %v935 = vadd.f32 %v894, %v934
    %v936 = vpop.f32.mrb[0].mxu0
    %937 = vdwg.mxu0
    %v938 = vld [vmem:[#allocation2 + $0x10] sm:$0xff]
    %v939 = vld [vmem:[#allocation2 + $0x18] sm:$0xff]
    %v940 = vadd.f32 %v938, %v932
    %v941 = vadd.f32 %v939, %v935
    %vm942 = vcmp.ge.f32.partialorder %v940, 0.0
    %vm943 = vcmp.ge.f32.partialorder %v941, 0.0
    %v944 = vmul.f32 %v940, 0.2
    %v945 = vmul.f32 %v941, 0.2
    %v946 = vsel %vm942, %v940, %v944
    %v947 = vsel %vm943, %v941, %v945
    %948 = vst [vmem:[#allocation2 + $0x10] sm:$0xff] %v946
    %949 = vst [vmem:[#allocation2 + $0x18] sm:$0xff] %v947
    %v950 = vld [vmem:[#allocation2 + $0x12] sm:$0xff]
    %v951 = vld [vmem:[#allocation2 + $0x1a] sm:$0xff]
    %v952 = vpack.c.bf16 %v951, %v950
    %v953 = vld [vmem:[#allocation2 + $0x11] sm:$0xff]
    %v954 = vld [vmem:[#allocation2 + $0x19] sm:$0xff]
    %v955 = vpack.c.bf16 %v954, %v953
    %v956 = vld [vmem:[#allocation2 + $0x10] sm:$0xff]
    %v957 = vld [vmem:[#allocation2 + $0x18] sm:$0xff]
    %v958 = vpack.c.bf16 %v957, %v956
    %v959 = vld [vmem:[#allocation2 + $0xf] sm:$0xff]
    %v960 = vld [vmem:[#allocation2 + $0x17] sm:$0xff]
    %v961 = vpack.c.bf16 %v960, %v959
    %v962 = vld [vmem:[#allocation2 + $0xe] sm:$0xff]
    %v963 = vld [vmem:[#allocation2 + $0x16] sm:$0xff]
    %v964 = vpack.c.bf16 %v963, %v962
    %v965 = vld [vmem:[#allocation2 + $0xd] sm:$0xff]
    %v966 = vld [vmem:[#allocation2 + $0x15] sm:$0xff]
    %v967 = vpack.c.bf16 %v966, %v965
    %v968 = vld [vmem:[#allocation2 + $0xc] sm:$0xff]
    %v969 = vld [vmem:[#allocation2 + $0x14] sm:$0xff]
    %v970 = vpack.c.bf16 %v969, %v968
    %v971 = vld [vmem:[#allocation8] sm:$0xff]
    %v972 = vld [vmem:[#allocation8 + $0x8] sm:$0x3f]
    %v975 = vcombine.high %v971, %v971
    %v977 = vunpack.c.l.s4 1983009808
    %v978 = vunpack.c.0.s8 %v977
    %v979 = vlaneseq
    %v980 = vshrl.u32 %v979, 7
    %v981 = vsub.s32 %v978, %v980
    %v982 = vrot.slane %v971, %v981
    %v984 = vunpack.c.l.s4 1983009808
    %v985 = vunpack.c.0.s8 %v984
    %v986 = vlaneseq
    %v987 = vshrl.u32 %v986, 7
    %v988 = vsub.s32 %v985, %v987
    %v989 = vrot.slane %v975, %v988
    %v990 = vcombine.high %v982, %v982
    %v991 = vcombine.high %v989, %v989
    %v992 = vcombine.high %v972, %v972
    %v994 = vunpack.c.l.s4 1983009808
    %v995 = vunpack.c.0.s8 %v994
    %v996 = vlaneseq
    %v997 = vshrl.u32 %v996, 7
    %v998 = vsub.s32 %v995, %v997
    %v999 = vrot.slane %v972, %v998
    %v1001 = vunpack.c.l.s4 1983009808
    %v1002 = vunpack.c.0.s8 %v1001
    %v1003 = vlaneseq
    %v1004 = vshrl.u32 %v1003, 7
    %v1005 = vsub.s32 %v1002, %v1004
    %v1006 = vrot.slane %v992, %v1005
    %v1007 = vcombine.high %v999, %v999
    %1015 = vmatprep.subr.bf16.mxu0 %v955
    %1016 = vmatpush1.bf16.xpose.msra.mxu0 %v952
    %1017 = vmatprep.subr.bf16.mxu0 0
    %1018 = vmatpush1.bf16.xpose.msra.mxu0 0
    %1019 = vmatprep.subr.bf16.mxu0 0
    %1020 = vmatpush1.bf16.xpose.msra.mxu0 0
    %1021 = vmatprep.subr.bf16.mxu0 0
    %1022 = vmatpush1.bf16.xpose.msra.mxu0 0
    %1023 = vmatprep.subr.bf16.mxu0 0
    %1024 = vmatpush1.bf16.xpose.msra.mxu0 0
    %1025 = vmatprep.subr.bf16.mxu0 0
    %1026 = vmatpush1.bf16.xpose.msra.mxu0 0
    %1027 = vmatprep.subr.bf16.mxu0 0
    %1028 = vmatpush1.bf16.xpose.msra.mxu0 0
    %1029 = vmatprep.subr.bf16.mxu0 0
    %1030 = vmatpush1.bf16.xpose.msra.mxu0 0
    %1031 = vmatprep.subr.bf16.mxu0 0
    %1032 = vmatpush1.bf16.xpose.msra.mxu0 0
    %1033 = vmatprep.subr.bf16.mxu0 0
    %1034 = vmatpush1.bf16.xpose.msra.mxu0 0
    %1035 = vmatprep.subr.bf16.mxu0 0
    %1036 = vmatpush1.bf16.xpose.msra.mxu0 0
    %1037 = vmatprep.subr.bf16.mxu0 0
    %1038 = vmatpush1.bf16.xpose.msra.mxu0 0
    %1039 = vmatprep.subr.bf16.mxu0 0
    %1040 = vmatpush1.bf16.xpose.msra.mxu0 0
    %1041 = vmatprep.subr.bf16.mxu0 0
    %1042 = vmatpush1.bf16.xpose.msra.mxu0 0
    %1043 = vmatprep.subr.bf16.mxu0 0
    %1044 = vmatpush1.bf16.xpose.msra.mxu0 0
    %1045 = vmatprep.subr.bf16.mxu0 0
    %1046 = vmatpush1.bf16.xpose.msra.mxu0 0
    %1047 = vmatprep.mubr.bf16.mxu0 %v990
    %1048 = vmatmul.mubr.bf16.gmra.mrb[0].mxu0 %v982
    %v1049 = vpop.f32.mrb[0].mxu0
    %v1050 = vadd.f32 0.0, %v1049
    %v1051 = vpop.f32.mrb[0].mxu0
    %v1052 = vpop.f32.mrb[0].mxu0
    %v1053 = vpop.f32.mrb[0].mxu0
    %1054 = vdwg.mxu0
    %1055 = vmatprep.subr.bf16.mxu0 %v961
    %1056 = vmatpush1.bf16.xpose.msra.mxu0 %v958
    %1057 = vmatprep.subr.bf16.mxu0 0
    %1058 = vmatpush1.bf16.xpose.msra.mxu0 0
    %1059 = vmatprep.subr.bf16.mxu0 0
    %1060 = vmatpush1.bf16.xpose.msra.mxu0 0
    %1061 = vmatprep.subr.bf16.mxu0 0
    %1062 = vmatpush1.bf16.xpose.msra.mxu0 0
    %1063 = vmatprep.subr.bf16.mxu0 0
    %1064 = vmatpush1.bf16.xpose.msra.mxu0 0
    %1065 = vmatprep.subr.bf16.mxu0 0
    %1066 = vmatpush1.bf16.xpose.msra.mxu0 0
    %1067 = vmatprep.subr.bf16.mxu0 0
    %1068 = vmatpush1.bf16.xpose.msra.mxu0 0
    %1069 = vmatprep.subr.bf16.mxu0 0
    %1070 = vmatpush1.bf16.xpose.msra.mxu0 0
    %1071 = vmatprep.subr.bf16.mxu0 0
    %1072 = vmatpush1.bf16.xpose.msra.mxu0 0
    %1073 = vmatprep.subr.bf16.mxu0 0
    %1074 = vmatpush1.bf16.xpose.msra.mxu0 0
    %1075 = vmatprep.subr.bf16.mxu0 0
    %1076 = vmatpush1.bf16.xpose.msra.mxu0 0
    %1077 = vmatprep.subr.bf16.mxu0 0
    %1078 = vmatpush1.bf16.xpose.msra.mxu0 0
    %1079 = vmatprep.subr.bf16.mxu0 0
    %1080 = vmatpush1.bf16.xpose.msra.mxu0 0
    %1081 = vmatprep.subr.bf16.mxu0 0
    %1082 = vmatpush1.bf16.xpose.msra.mxu0 0
    %1083 = vmatprep.subr.bf16.mxu0 0
    %1084 = vmatpush1.bf16.xpose.msra.mxu0 0
    %1085 = vmatprep.subr.bf16.mxu0 0
    %1086 = vmatpush1.bf16.xpose.msra.mxu0 0
    %1087 = vmatprep.mubr.bf16.mxu0 %v991
    %1088 = vmatmul.mubr.bf16.gmra.mrb[0].mxu0 %v989
    %v1089 = vpop.f32.mrb[0].mxu0
    %v1090 = vadd.f32 %v1050, %v1089
    %v1091 = vpop.f32.mrb[0].mxu0
    %v1092 = vpop.f32.mrb[0].mxu0
    %v1093 = vpop.f32.mrb[0].mxu0
    %1094 = vdwg.mxu0
    %1095 = vmatprep.subr.bf16.mxu0 %v967
    %1096 = vmatpush1.bf16.xpose.msra.mxu0 %v964
    %1097 = vmatprep.subr.bf16.mxu0 0
    %1098 = vmatpush1.bf16.xpose.msra.mxu0 0
    %1099 = vmatprep.subr.bf16.mxu0 0
    %1100 = vmatpush1.bf16.xpose.msra.mxu0 0
    %1101 = vmatprep.subr.bf16.mxu0 0
    %1102 = vmatpush1.bf16.xpose.msra.mxu0 0
    %1103 = vmatprep.subr.bf16.mxu0 0
    %1104 = vmatpush1.bf16.xpose.msra.mxu0 0
    %1105 = vmatprep.subr.bf16.mxu0 0
    %1106 = vmatpush1.bf16.xpose.msra.mxu0 0
    %1107 = vmatprep.subr.bf16.mxu0 0
    %1108 = vmatpush1.bf16.xpose.msra.mxu0 0
    %1109 = vmatprep.subr.bf16.mxu0 0
    %1110 = vmatpush1.bf16.xpose.msra.mxu0 0
    %1111 = vmatprep.subr.bf16.mxu0 0
    %1112 = vmatpush1.bf16.xpose.msra.mxu0 0
    %1113 = vmatprep.subr.bf16.mxu0 0
    %1114 = vmatpush1.bf16.xpose.msra.mxu0 0
    %1115 = vmatprep.subr.bf16.mxu0 0
    %1116 = vmatpush1.bf16.xpose.msra.mxu0 0
    %1117 = vmatprep.subr.bf16.mxu0 0
    %1118 = vmatpush1.bf16.xpose.msra.mxu0 0
    %1119 = vmatprep.subr.bf16.mxu0 0
    %1120 = vmatpush1.bf16.xpose.msra.mxu0 0
    %1121 = vmatprep.subr.bf16.mxu0 0
    %1122 = vmatpush1.bf16.xpose.msra.mxu0 0
    %1123 = vmatprep.subr.bf16.mxu0 0
    %1124 = vmatpush1.bf16.xpose.msra.mxu0 0
    %1125 = vmatprep.subr.bf16.mxu0 0
    %1126 = vmatpush1.bf16.xpose.msra.mxu0 0
    %1127 = vmatprep.mubr.bf16.mxu0 %v1007
    %1128 = vmatmul.mubr.bf16.gmra.mrb[0].mxu0 %v999
    %v1129 = vpop.f32.mrb[0].mxu0
    %v1130 = vadd.f32 %v1090, %v1129
    %v1131 = vpop.f32.mrb[0].mxu0
    %v1132 = vpop.f32.mrb[0].mxu0
    %v1133 = vpop.f32.mrb[0].mxu0
    %1134 = vdwg.mxu0
    %1135 = vmatprep.subr.bf16.mxu0 0
    %1136 = vmatpush1.bf16.xpose.msra.mxu0 %v970
    %1137 = vmatprep.subr.bf16.mxu0 0
    %1138 = vmatpush1.bf16.xpose.msra.mxu0 0
    %1139 = vmatprep.subr.bf16.mxu0 0
    %1140 = vmatpush1.bf16.xpose.msra.mxu0 0
    %1141 = vmatprep.subr.bf16.mxu0 0
    %1142 = vmatpush1.bf16.xpose.msra.mxu0 0
    %1143 = vmatprep.subr.bf16.mxu0 0
    %1144 = vmatpush1.bf16.xpose.msra.mxu0 0
    %1145 = vmatprep.subr.bf16.mxu0 0
    %1146 = vmatpush1.bf16.xpose.msra.mxu0 0
    %1147 = vmatprep.subr.bf16.mxu0 0
    %1148 = vmatpush1.bf16.xpose.msra.mxu0 0
    %1149 = vmatprep.subr.bf16.mxu0 0
    %1150 = vmatpush1.bf16.xpose.msra.mxu0 0
    %1151 = vmatprep.subr.bf16.mxu0 0
    %1152 = vmatpush1.bf16.xpose.msra.mxu0 0
    %1153 = vmatprep.subr.bf16.mxu0 0
    %1154 = vmatpush1.bf16.xpose.msra.mxu0 0
    %1155 = vmatprep.subr.bf16.mxu0 0
    %1156 = vmatpush1.bf16.xpose.msra.mxu0 0
    %1157 = vmatprep.subr.bf16.mxu0 0
    %1158 = vmatpush1.bf16.xpose.msra.mxu0 0
    %1159 = vmatprep.subr.bf16.mxu0 0
    %1160 = vmatpush1.bf16.xpose.msra.mxu0 0
    %1161 = vmatprep.subr.bf16.mxu0 0
    %1162 = vmatpush1.bf16.xpose.msra.mxu0 0
    %1163 = vmatprep.subr.bf16.mxu0 0
    %1164 = vmatpush1.bf16.xpose.msra.mxu0 0
    %1165 = vmatprep.subr.bf16.mxu0 0
    %1166 = vmatpush1.bf16.xpose.msra.mxu0 0
    %1167 = vmatprep.mubr.bf16.mxu0 0
    %1168 = vmatmul.mubr.bf16.gmra.mrb[0].mxu0 %v1006
    %v1169 = vpop.f32.mrb[0].mxu0
    %v1170 = vadd.f32 %v1130, %v1169
    %v1171 = vpop.f32.mrb[0].mxu0
    %v1172 = vpop.f32.mrb[0].mxu0
    %v1173 = vpop.f32.mrb[0].mxu0
    %1174 = vdwg.mxu0
    %vm1175 = vcmask 125952
    %1176 = vst.msk [vmem:[#allocation9] sm:$0xf] %vm1175, %v1170
    // Predicated region
    $region26: #{forward.3} parent=1 // pred_check
      _
    $region27: #{forward.3} parent=1 // pred_check_branch
      %1178 = sbr.rel (0) target = $region29
    $region28: #{forward.3} parent=1 // pred_region
      %s1180 = ssub.s32 64, 64
      %1181 = vsyncadd [#allocation5], %s1180
      %s1183 = sshll.u32 [#allocation9], 4
      %s1184 = int_to_ptr.vmem [resolvable:$true] %s1183
      %1186 = dma.vmem_to_hbm [thread:$0]  %s1184, 64, %s3, [#allocation5]
    $region29: #{forward.3} parent=1 // pred_fallthru
      _
    // Predicated region
    $region30: #{forward.3} parent=1 // pred_check
      _
    $region31: #{forward.3} parent=1 // pred_check_branch
      %1188 = sbr.rel (0) target = $region33
    $region32: #{forward.3} parent=1 // pred_region
      %1189 = dma.done [#allocation5], 64
    $region33: #{forward.3} parent=1 // pred_fallthru
      _
    %1190 = vsyncpa [#allocation4], 1
    %1191 = vsyncpa [#allocation7], 1
    %1192 = vsyncpa [#allocation5], 1

// kernel: forward.2
$region0: #{forward.2}
  #allocation0 [shape = 'u32[]', space=smem, size = 0x4, offset = 0x4, fixed_abs, tag = 'smem constant byte address 0x4 - core index']
  #allocation1 [shape = 'u32[144,128]{1,0:T(1,128)}', space=vmem, size = 0x12000, scoped, tag = 'internal scratch']
  #allocation2 [shape = 'f32[40,128]{1,0:T(8,128)}', space=vmem, size = 0x5000, scoped, tag = 'scratch operand']
  %s0 = inlined_call_operand.hbm [shape: bf16[1,8,16], index: 0, kind: input, shape index: {}]
  %s1 = inlined_call_operand.hbm [shape: bf16[16,128], index: 1, kind: input, shape index: {}]
  %s2 = inlined_call_operand.hbm [shape: bf16[3,384,128], index: 2, kind: input, shape index: {}]
  %s3 = inlined_call_operand.hbm [shape: bf16[384,256], index: 3, kind: input, shape index: {}]
  %s4 = inlined_call_operand.hbm [shape: bf16[1,8,256], index: 4, kind: output, shape index: {}]
  %s5 = sld [smem:[#allocation0]]
  $region42: #{forward.2} parent=0
    _
  %s7 = ssub.s32 1, %s5
  %s8 = scalar_select 0, %s7, %s5
  $region1: #{forward.2} parent=0
    #allocation3 [shape = 'u8[2048]{0}', space=vmem, size = 0x800, scoped, tag = 'input window, operand 0, single buffered']
    #allocation4 [shape = 's32[1]{0}', space=sflag, size = 0x4, scoped, tag = 'scoped memory for forward.2']
    #allocation5 [shape = 's32[1]{0}', space=sflag, size = 0x4, scoped, tag = 'scoped memory for forward.2']
    #allocation6 [shape = 'u8[4096]{0}', space=vmem, size = 0x1000, scoped, tag = 'input window, operand 1, single buffered']
    #allocation7 [shape = 's32[1]{0}', space=sflag, size = 0x4, scoped, tag = 'scoped memory for forward.2']
    #allocation8 [shape = 'u8[294912]{0}', space=vmem, size = 0x48000, scoped, tag = 'input window, operand 2, single buffered']
    #allocation9 [shape = 'u8[196608]{0}', space=vmem, size = 0x30000, scoped, tag = 'input window, operand 3, single buffered']
    #allocation10 [shape = 's32[1]{0}', space=sflag, size = 0x4, scoped, tag = 'scoped memory for forward.2']
    #allocation11 [shape = 'u8[4096]{0}', space=vmem, size = 0x1000, scoped, tag = 'output window, operand 0, single buffered']
    %9 = vsyncpa [#allocation4], 0
    %10 = vsyncpa [#allocation7], 0
    %11 = vsyncpa [#allocation10], 0
    %12 = vsyncpa [#allocation5], 0
    // Predicated region
    $region2: #{forward.2} parent=1 // pred_check
      _
    $region3: #{forward.2} parent=1 // pred_check_branch
      %14 = sbr.rel (0) target = $region5
    $region4: #{forward.2} parent=1 // pred_region
      %s16 = ssub.s32 64, 64
      %17 = vsyncadd [#allocation4], %s16
      %s19 = sshll.u32 [#allocation3], 4
      %s20 = int_to_ptr.vmem [resolvable:$true] %s19
      %22 = dma.hbm_to_vmem [thread:$0]  %s0, 64, %s20, [#allocation4]
    $region5: #{forward.2} parent=1 // pred_fallthru
      _
    // Predicated region
    $region6: #{forward.2} parent=1 // pred_check
      _
    $region7: #{forward.2} parent=1 // pred_check_branch
      %24 = sbr.rel (0) target = $region9
    $region8: #{forward.2} parent=1 // pred_region
      %s26 = ssub.s32 128, 128
      %27 = vsyncadd [#allocation7], %s26
      %s28 = sshll.u32 [#allocation6], 4
      %s29 = int_to_ptr.vmem [resolvable:$true] %s28
      %34 = dma.hbm_to_vmem [thread:$0]  %s1, 128, %s29, [#allocation7], 64, 64, 4
    $region9: #{forward.2} parent=1 // pred_fallthru
      _
    // Predicated region
    $region10: #{forward.2} parent=1 // pred_check
      _
    $region11: #{forward.2} parent=1 // pred_check_branch
      %36 = sbr.rel (0) target = $region13
    $region12: #{forward.2} parent=1 // pred_region
      %s38 = ssub.s32 9216, 9216
      %39 = vsyncadd [#allocation7], %s38
      %s40 = sshll.u32 [#allocation8], 4
      %s41 = int_to_ptr.vmem [resolvable:$true] %s40
      %46 = dma.hbm_to_vmem [thread:$0]  %s2, 9216, %s41, [#allocation7], 64, 64, 4
    $region13: #{forward.2} parent=1 // pred_fallthru
      _
    // Predicated region
    $region14: #{forward.2} parent=1 // pred_check
      _
    $region15: #{forward.2} parent=1 // pred_check_branch
      %48 = sbr.rel (0) target = $region17
    $region16: #{forward.2} parent=1 // pred_region
      %s50 = ssub.s32 6144, 6144
      %51 = vsyncadd [#allocation10], %s50
      %s52 = sshll.u32 [#allocation9], 4
      %s53 = int_to_ptr.vmem [resolvable:$true] %s52
      %58 = dma.hbm_to_vmem [thread:$0]  %s3, 6144, %s53, [#allocation10], 128, 128, 8
    $region17: #{forward.2} parent=1 // pred_fallthru
      _
    // Predicated region
    $region18: #{forward.2} parent=1 // pred_check
      _
    $region19: #{forward.2} parent=1 // pred_check_branch
      %60 = sbr.rel (0) target = $region21
    $region20: #{forward.2} parent=1 // pred_region
      %61 = dma.done [#allocation4], 64
    $region21: #{forward.2} parent=1 // pred_fallthru
      _
    // Predicated region
    $region22: #{forward.2} parent=1 // pred_check
      _
    $region23: #{forward.2} parent=1 // pred_check_branch
      %63 = sbr.rel (0) target = $region25
    $region24: #{forward.2} parent=1 // pred_region
      %64 = dma.done [#allocation7], 128
    $region25: #{forward.2} parent=1 // pred_fallthru
      _
    // Predicated region
    $region26: #{forward.2} parent=1 // pred_check
      _
    $region27: #{forward.2} parent=1 // pred_check_branch
      %66 = sbr.rel (0) target = $region29
    $region28: #{forward.2} parent=1 // pred_region
      %67 = dma.done [#allocation7], 9216
    $region29: #{forward.2} parent=1 // pred_fallthru
      _
    // Predicated region
    $region30: #{forward.2} parent=1 // pred_check
      _
    $region31: #{forward.2} parent=1 // pred_check_branch
      %69 = sbr.rel (0) target = $region33
    $region32: #{forward.2} parent=1 // pred_region
      %70 = dma.done [#allocation10], 6144
    $region33: #{forward.2} parent=1 // pred_fallthru
      _
    %v72 = vld [vmem:[#allocation3] sm:$0xf]
    %v73 = vld [vmem:[#allocation6] sm:$0xf]
    %v74 = vld [vmem:[#allocation6 + $0x4] sm:$0xf]
    %v77 = vunpack.c.l.b16 %v73
    %v78 = vunpack.c.l.b16 %v74
    %v79 = vpack.c.b16 %v78, %v77
    %vm81 = vcmask 130048
    %v83 = vsel %vm81, %v72, 0
    %85 = vmatprep.subr.bf16.mxu0 0
    %86 = vmatpush1.bf16.msra.mxu0 %v79
    %87 = vmatprep.subr.bf16.mxu0 0
    %88 = vmatpush1.bf16.msra.mxu0 0
    %89 = vmatprep.subr.bf16.mxu0 0
    %90 = vmatpush1.bf16.msra.mxu0 0
    %91 = vmatprep.subr.bf16.mxu0 0
    %92 = vmatpush1.bf16.msra.mxu0 0
    %93 = vmatprep.subr.bf16.mxu0 0
    %94 = vmatpush1.bf16.msra.mxu0 0
    %95 = vmatprep.subr.bf16.mxu0 0
    %96 = vmatpush1.bf16.msra.mxu0 0
    %97 = vmatprep.subr.bf16.mxu0 0
    %98 = vmatpush1.bf16.msra.mxu0 0
    %99 = vmatprep.subr.bf16.mxu0 0
    %100 = vmatpush1.bf16.msra.mxu0 0
    %101 = vmatprep.subr.bf16.mxu0 0
    %102 = vmatpush1.bf16.msra.mxu0 0
    %103 = vmatprep.subr.bf16.mxu0 0
    %104 = vmatpush1.bf16.msra.mxu0 0
    %105 = vmatprep.subr.bf16.mxu0 0
    %106 = vmatpush1.bf16.msra.mxu0 0
    %107 = vmatprep.subr.bf16.mxu0 0
    %108 = vmatpush1.bf16.msra.mxu0 0
    %109 = vmatprep.subr.bf16.mxu0 0
    %110 = vmatpush1.bf16.msra.mxu0 0
    %111 = vmatprep.subr.bf16.mxu0 0
    %112 = vmatpush1.bf16.msra.mxu0 0
    %113 = vmatprep.subr.bf16.mxu0 0
    %114 = vmatpush1.bf16.msra.mxu0 0
    %115 = vmatprep.subr.bf16.mxu0 0
    %116 = vmatpush1.bf16.msra.mxu0 0
    %117 = vmatprep.mubr.bf16.mxu0 0
    %118 = vmatmul.mubr.bf16.gmra.mrb[0].mxu0 %v83
    %v119 = vpop.f32.mrb[0].mxu0
    %v120 = vadd.f32 0.0, %v119
    %v121 = vpop.f32.mrb[0].mxu0
    %v122 = vpop.f32.mrb[0].mxu0
    %v123 = vpop.f32.mrb[0].mxu0
    %124 = vdwg.mxu0
    %vm125 = vcmp.ge.f32.partialorder %v120, 0.0
    %v126 = vmul.f32 %v120, 0.2
    %v127 = vsel %vm125, %v120, %v126
    %128 = vst [vmem:[#allocation2] sm:$0xff] 0.0
    %129 = vst [vmem:[#allocation2 + $0x8] sm:$0xff] 0.0
    %130 = vst [vmem:[#allocation2 + $0x18] sm:$0xff] 0.0
    %131 = vst [vmem:[#allocation2 + $0x20] sm:$0xff] 0.0
    %132 = vst [vmem:[#allocation2 + $0x10] sm:$0xff] %v127
    %v133 = vld [vmem:[#allocation2 + $0xf] sm:$0xff]
    %v134 = vpack.c.bf16 %v133, %v133
    %v135 = vld [vmem:[#allocation2 + $0x10] sm:$0xff]
    %v136 = vpack.c.bf16 %v135, %v135
    %v137 = vld [vmem:[#allocation2 + $0x11] sm:$0xff]
    %v138 = vpack.c.bf16 %v137, %v137
    %v139 = vld [vmem:[#allocation8] sm:$0xf]
    %v140 = vld [vmem:[#allocation8 + $0x4] sm:$0xf]
    %v141 = vld [vmem:[#allocation8 + $0x8] sm:$0xf]
    %v142 = vld [vmem:[#allocation8 + $0xc] sm:$0xf]
    %v143 = vld [vmem:[#allocation8 + $0x10] sm:$0xf]
    %v144 = vld [vmem:[#allocation8 + $0x14] sm:$0xf]
    %v145 = vld [vmem:[#allocation8 + $0x18] sm:$0xf]
    %v146 = vld [vmem:[#allocation8 + $0x1c] sm:$0xf]
    %v147 = vld [vmem:[#allocation8 + $0x20] sm:$0xf]
    %v148 = vld [vmem:[#allocation8 + $0x24] sm:$0xf]
    %v149 = vld [vmem:[#allocation8 + $0x28] sm:$0xf]
    %v150 = vld [vmem:[#allocation8 + $0x2c] sm:$0xf]
    %v151 = vld [vmem:[#allocation8 + $0x30] sm:$0xf]
    %v152 = vld [vmem:[#allocation8 + $0x34] sm:$0xf]
    %v153 = vld [vmem:[#allocation8 + $0x38] sm:$0xf]
    %v154 = vld [vmem:[#allocation8 + $0x3c] sm:$0xf]
    %v155 = vld [vmem:[#allocation8 + $0x40] sm:$0xf]
    %v156 = vld [vmem:[#allocation8 + $0x44] sm:$0xf]
    %v157 = vld [vmem:[#allocation8 + $0x48] sm:$0xf]
    %v158 = vld [vmem:[#allocation8 + $0x4c] sm:$0xf]
    %v159 = vld [vmem:[#allocation8 + $0x50] sm:$0xf]
    %v160 = vld [vmem:[#allocation8 + $0x54] sm:$0xf]
    %v161 = vld [vmem:[#allocation8 + $0x58] sm:$0xf]
    %v162 = vld [vmem:[#allocation8 + $0x5c] sm:$0xf]
    %v163 = vld [vmem:[#allocation8 + $0x60] sm:$0xf]
    %v164 = vld [vmem:[#allocation8 + $0x64] sm:$0xf]
    %v165 = vld [vmem:[#allocation8 + $0x68] sm:$0xf]
    %v166 = vld [vmem:[#allocation8 + $0x6c] sm:$0xf]
    %v167 = vld [vmem:[#allocation8 + $0x70] sm:$0xf]
    %v168 = vld [vmem:[#allocation8 + $0x74] sm:$0xf]
    %v169 = vld [vmem:[#allocation8 + $0x78] sm:$0xf]
    %v170 = vld [vmem:[#allocation8 + $0x7c] sm:$0xf]
    %v171 = vld [vmem:[#allocation8 + $0x80] sm:$0xf]
    %v172 = vld [vmem:[#allocation8 + $0x84] sm:$0xf]
    %v173 = vld [vmem:[#allocation8 + $0x88] sm:$0xf]
    %v174 = vld [vmem:[#allocation8 + $0x8c] sm:$0xf]
    %v175 = vld [vmem:[#allocation8 + $0x90] sm:$0xf]
    %v176 = vld [vmem:[#allocation8 + $0x94] sm:$0xf]
    %v177 = vld [vmem:[#allocation8 + $0x98] sm:$0xf]
    %v178 = vld [vmem:[#allocation8 + $0x9c] sm:$0xf]
    %v179 = vld [vmem:[#allocation8 + $0xa0] sm:$0xf]
    %v180 = vld [vmem:[#allocation8 + $0xa4] sm:$0xf]
    %v181 = vld [vmem:[#allocation8 + $0xa8] sm:$0xf]
    %v182 = vld [vmem:[#allocation8 + $0xac] sm:$0xf]
    %v183 = vld [vmem:[#allocation8 + $0xb0] sm:$0xf]
    %v184 = vld [vmem:[#allocation8 + $0xb4] sm:$0xf]
    %v185 = vld [vmem:[#allocation8 + $0xb8] sm:$0xf]
    %v186 = vld [vmem:[#allocation8 + $0xbc] sm:$0xf]
    %v235 = vunpack.c.l.b16 %v139
    %v236 = vunpack.c.l.b16 %v140
    %v237 = vunpack.c.l.b16 %v141
    %v238 = vunpack.c.l.b16 %v142
    %v239 = vunpack.c.l.b16 %v143
    %v240 = vunpack.c.l.b16 %v144
    %v241 = vunpack.c.l.b16 %v145
    %v242 = vunpack.c.l.b16 %v146
    %v243 = vunpack.c.l.b16 %v147
    %v244 = vunpack.c.l.b16 %v148
    %v245 = vunpack.c.l.b16 %v149
    %v246 = vunpack.c.l.b16 %v150
    %v247 = vunpack.c.l.b16 %v151
    %v248 = vunpack.c.l.b16 %v152
    %v249 = vunpack.c.l.b16 %v153
    %v250 = vunpack.c.l.b16 %v154
    %v251 = vunpack.c.l.b16 %v155
    %v252 = vunpack.c.l.b16 %v156
    %v253 = vunpack.c.l.b16 %v157
    %v254 = vunpack.c.l.b16 %v158
    %v255 = vunpack.c.l.b16 %v159
    %v256 = vunpack.c.l.b16 %v160
    %v257 = vunpack.c.l.b16 %v161
    %v258 = vunpack.c.l.b16 %v162
    %v259 = vunpack.c.l.b16 %v163
    %v260 = vunpack.c.l.b16 %v164
    %v261 = vunpack.c.l.b16 %v165
    %v262 = vunpack.c.l.b16 %v166
    %v263 = vunpack.c.l.b16 %v167
    %v264 = vunpack.c.l.b16 %v168
    %v265 = vunpack.c.l.b16 %v169
    %v266 = vunpack.c.l.b16 %v170
    %v267 = vunpack.c.l.b16 %v171
    %v268 = vunpack.c.l.b16 %v172
    %v269 = vunpack.c.l.b16 %v173
    %v270 = vunpack.c.l.b16 %v174
    %v271 = vunpack.c.l.b16 %v175
    %v272 = vunpack.c.l.b16 %v176
    %v273 = vunpack.c.l.b16 %v177
    %v274 = vunpack.c.l.b16 %v178
    %v275 = vunpack.c.l.b16 %v179
    %v276 = vunpack.c.l.b16 %v180
    %v277 = vunpack.c.l.b16 %v181
    %v278 = vunpack.c.l.b16 %v182
    %v279 = vunpack.c.l.b16 %v183
    %v280 = vunpack.c.l.b16 %v184
    %v281 = vunpack.c.l.b16 %v185
    %v282 = vunpack.c.l.b16 %v186
    %v283 = vpack.c.b16 %v236, %v235
    %v284 = vpack.c.b16 %v238, %v237
    %v285 = vpack.c.b16 %v240, %v239
    %v286 = vpack.c.b16 %v242, %v241
    %v287 = vpack.c.b16 %v244, %v243
    %v288 = vpack.c.b16 %v246, %v245
    %v289 = vpack.c.b16 %v248, %v247
    %v290 = vpack.c.b16 %v250, %v249
    %v291 = vpack.c.b16 %v252, %v251
    %v292 = vpack.c.b16 %v254, %v253
    %v293 = vpack.c.b16 %v256, %v255
    %v294 = vpack.c.b16 %v258, %v257
    %v295 = vpack.c.b16 %v260, %v259
    %v296 = vpack.c.b16 %v262, %v261
    %v297 = vpack.c.b16 %v264, %v263
    %v298 = vpack.c.b16 %v266, %v265
    %v299 = vpack.c.b16 %v268, %v267
    %v300 = vpack.c.b16 %v270, %v269
    %v301 = vpack.c.b16 %v272, %v271
    %v302 = vpack.c.b16 %v274, %v273
    %v303 = vpack.c.b16 %v276, %v275
    %v304 = vpack.c.b16 %v278, %v277
    %v305 = vpack.c.b16 %v280, %v279
    %v306 = vpack.c.b16 %v282, %v281
    %331 = vmatprep.subr.bf16.mxu0 0
    %332 = vmatpush1.bf16.msra.mxu0 %v283
    %333 = vmatprep.subr.bf16.mxu0 0
    %334 = vmatpush1.bf16.msra.mxu0 %v284
    %335 = vmatprep.subr.bf16.mxu0 0
    %336 = vmatpush1.bf16.msra.mxu0 %v285
    %337 = vmatprep.subr.bf16.mxu0 0
    %338 = vmatpush1.bf16.msra.mxu0 %v286
    %339 = vmatprep.subr.bf16.mxu0 0
    %340 = vmatpush1.bf16.msra.mxu0 %v287
    %341 = vmatprep.subr.bf16.mxu0 0
    %342 = vmatpush1.bf16.msra.mxu0 %v288
    %343 = vmatprep.subr.bf16.mxu0 0
    %344 = vmatpush1.bf16.msra.mxu0 %v289
    %345 = vmatprep.subr.bf16.mxu0 0
    %346 = vmatpush1.bf16.msra.mxu0 %v290
    %347 = vmatprep.subr.bf16.mxu0 0
    %348 = vmatpush1.bf16.msra.mxu0 %v291
    %349 = vmatprep.subr.bf16.mxu0 0
    %350 = vmatpush1.bf16.msra.mxu0 %v292
    %351 = vmatprep.subr.bf16.mxu0 0
    %352 = vmatpush1.bf16.msra.mxu0 %v293
    %353 = vmatprep.subr.bf16.mxu0 0
    %354 = vmatpush1.bf16.msra.mxu0 %v294
    %355 = vmatprep.subr.bf16.mxu0 0
    %356 = vmatpush1.bf16.msra.mxu0 %v295
    %357 = vmatprep.subr.bf16.mxu0 0
    %358 = vmatpush1.bf16.msra.mxu0 %v296
    %359 = vmatprep.subr.bf16.mxu0 0
    %360 = vmatpush1.bf16.msra.mxu0 %v297
    %361 = vmatprep.subr.bf16.mxu0 0
    %362 = vmatpush1.bf16.msra.mxu0 %v298
    %363 = vmatprep.mubr.bf16.mxu0 %v136
    %364 = vmatmul.mubr.bf16.gmra.mrb[0].mxu0 %v134
    %v365 = vpop.f32.mrb[0].mxu0
    %v366 = vadd.f32 0.0, %v365
    %v367 = vpop.f32.mrb[0].mxu0
    %v368 = vpop.f32.mrb[0].mxu0
    %v369 = vpop.f32.mrb[0].mxu0
    %370 = vdwg.mxu0
    %371 = vmatprep.subr.bf16.mxu0 0
    %372 = vmatpush1.bf16.msra.mxu0 %v299
    %373 = vmatprep.subr.bf16.mxu0 0
    %374 = vmatpush1.bf16.msra.mxu0 %v300
    %375 = vmatprep.subr.bf16.mxu0 0
    %376 = vmatpush1.bf16.msra.mxu0 %v301
    %377 = vmatprep.subr.bf16.mxu0 0
    %378 = vmatpush1.bf16.msra.mxu0 %v302
    %379 = vmatprep.subr.bf16.mxu0 0
    %380 = vmatpush1.bf16.msra.mxu0 %v303
    %381 = vmatprep.subr.bf16.mxu0 0
    %382 = vmatpush1.bf16.msra.mxu0 %v304
    %383 = vmatprep.subr.bf16.mxu0 0
    %384 = vmatpush1.bf16.msra.mxu0 %v305
    %385 = vmatprep.subr.bf16.mxu0 0
    %386 = vmatpush1.bf16.msra.mxu0 %v306
    %387 = vmatprep.subr.bf16.mxu0 0
    %388 = vmatpush1.bf16.msra.mxu0 0
    %389 = vmatprep.subr.bf16.mxu0 0
    %390 = vmatpush1.bf16.msra.mxu0 0
    %391 = vmatprep.subr.bf16.mxu0 0
    %392 = vmatpush1.bf16.msra.mxu0 0
    %393 = vmatprep.subr.bf16.mxu0 0
    %394 = vmatpush1.bf16.msra.mxu0 0
    %395 = vmatprep.subr.bf16.mxu0 0
    %396 = vmatpush1.bf16.msra.mxu0 0
    %397 = vmatprep.subr.bf16.mxu0 0
    %398 = vmatpush1.bf16.msra.mxu0 0
    %399 = vmatprep.subr.bf16.mxu0 0
    %400 = vmatpush1.bf16.msra.mxu0 0
    %401 = vmatprep.subr.bf16.mxu0 0
    %402 = vmatpush1.bf16.msra.mxu0 0
    %403 = vmatprep.mubr.bf16.mxu0 0
    %404 = vmatmul.mubr.bf16.gmra.mrb[0].mxu0 %v138
    %v405 = vpop.f32.mrb[0].mxu0
    %v406 = vadd.f32 %v366, %v405
    %v407 = vpop.f32.mrb[0].mxu0
    %v408 = vpop.f32.mrb[0].mxu0
    %v409 = vpop.f32.mrb[0].mxu0
    %410 = vdwg.mxu0
    %v411 = vadd.f32 %v135, %v406
    %vm412 = vcmp.ge.f32.partialorder %v411, 0.0
    %v413 = vmul.f32 %v411, 0.2
    %v414 = vsel %vm412, %v411, %v413
    %415 = vst [vmem:[#allocation2 + $0x10] sm:$0xff] %v414
    %v416 = vld [vmem:[#allocation2 + $0xc] sm:$0xff]
    %v417 = vpack.c.bf16 %v416, %v416
    %v418 = vld [vmem:[#allocation2 + $0xf] sm:$0xff]
    %v419 = vpack.c.bf16 %v418, %v418
    %v420 = vld [vmem:[#allocation2 + $0x12] sm:$0xff]
    %v421 = vpack.c.bf16 %v420, %v420
    %s422 = scalar_lea.vmem [#allocation8], 192
    %v423 = vld [vmem:[%s422] sm:$0xf]
    %v424 = vld [vmem:[%s422 + $0x4] sm:$0xf]
    %v425 = vld [vmem:[%s422 + $0x8] sm:$0xf]
    %v426 = vld [vmem:[%s422 + $0xc] sm:$0xf]
    %v427 = vld [vmem:[%s422 + $0x10] sm:$0xf]
    %v428 = vld [vmem:[%s422 + $0x14] sm:$0xf]
    %v429 = vld [vmem:[%s422 + $0x18] sm:$0xf]
    %v430 = vld [vmem:[%s422 + $0x1c] sm:$0xf]
    %v431 = vld [vmem:[%s422 + $0x20] sm:$0xf]
    %v432 = vld [vmem:[%s422 + $0x24] sm:$0xf]
    %v433 = vld [vmem:[%s422 + $0x28] sm:$0xf]
    %v434 = vld [vmem:[%s422 + $0x2c] sm:$0xf]
    %v435 = vld [vmem:[%s422 + $0x30] sm:$0xf]
    %v436 = vld [vmem:[%s422 + $0x34] sm:$0xf]
    %v437 = vld [vmem:[%s422 + $0x38] sm:$0xf]
    %v438 = vld [vmem:[%s422 + $0x3c] sm:$0xf]
    %v439 = vld [vmem:[%s422 + $0x40] sm:$0xf]
    %v440 = vld [vmem:[%s422 + $0x44] sm:$0xf]
    %v441 = vld [vmem:[%s422 + $0x48] sm:$0xf]
    %v442 = vld [vmem:[%s422 + $0x4c] sm:$0xf]
    %v443 = vld [vmem:[%s422 + $0x50] sm:$0xf]
    %v444 = vld [vmem:[%s422 + $0x54] sm:$0xf]
    %v445 = vld [vmem:[%s422 + $0x58] sm:$0xf]
    %v446 = vld [vmem:[%s422 + $0x5c] sm:$0xf]
    %v447 = vld [vmem:[%s422 + $0x60] sm:$0xf]
    %v448 = vld [vmem:[%s422 + $0x64] sm:$0xf]
    %v449 = vld [vmem:[%s422 + $0x68] sm:$0xf]
    %v450 = vld [vmem:[%s422 + $0x6c] sm:$0xf]
    %v451 = vld [vmem:[%s422 + $0x70] sm:$0xf]
    %v452 = vld [vmem:[%s422 + $0x74] sm:$0xf]
    %v453 = vld [vmem:[%s422 + $0x78] sm:$0xf]
    %v454 = vld [vmem:[%s422 + $0x7c] sm:$0xf]
    %v455 = vld [vmem:[%s422 + $0x80] sm:$0xf]
    %v456 = vld [vmem:[%s422 + $0x84] sm:$0xf]
    %v457 = vld [vmem:[%s422 + $0x88] sm:$0xf]
    %v458 = vld [vmem:[%s422 + $0x8c] sm:$0xf]
    %v459 = vld [vmem:[%s422 + $0x90] sm:$0xf]
    %v460 = vld [vmem:[%s422 + $0x94] sm:$0xf]
    %v461 = vld [vmem:[%s422 + $0x98] sm:$0xf]
    %v462 = vld [vmem:[%s422 + $0x9c] sm:$0xf]
    %v463 = vld [vmem:[%s422 + $0xa0] sm:$0xf]
    %v464 = vld [vmem:[%s422 + $0xa4] sm:$0xf]
    %v465 = vld [vmem:[%s422 + $0xa8] sm:$0xf]
    %v466 = vld [vmem:[%s422 + $0xac] sm:$0xf]
    %v467 = vld [vmem:[%s422 + $0xb0] sm:$0xf]
    %v468 = vld [vmem:[%s422 + $0xb4] sm:$0xf]
    %v469 = vld [vmem:[%s422 + $0xb8] sm:$0xf]
    %v470 = vld [vmem:[%s422 + $0xbc] sm:$0xf]
    %v519 = vunpack.c.l.b16 %v423
    %v520 = vunpack.c.l.b16 %v424
    %v521 = vunpack.c.l.b16 %v425
    %v522 = vunpack.c.l.b16 %v426
    %v523 = vunpack.c.l.b16 %v427
    %v524 = vunpack.c.l.b16 %v428
    %v525 = vunpack.c.l.b16 %v429
    %v526 = vunpack.c.l.b16 %v430
    %v527 = vunpack.c.l.b16 %v431
    %v528 = vunpack.c.l.b16 %v432
    %v529 = vunpack.c.l.b16 %v433
    %v530 = vunpack.c.l.b16 %v434
    %v531 = vunpack.c.l.b16 %v435
    %v532 = vunpack.c.l.b16 %v436
    %v533 = vunpack.c.l.b16 %v437
    %v534 = vunpack.c.l.b16 %v438
    %v535 = vunpack.c.l.b16 %v439
    %v536 = vunpack.c.l.b16 %v440
    %v537 = vunpack.c.l.b16 %v441
    %v538 = vunpack.c.l.b16 %v442
    %v539 = vunpack.c.l.b16 %v443
    %v540 = vunpack.c.l.b16 %v444
    %v541 = vunpack.c.l.b16 %v445
    %v542 = vunpack.c.l.b16 %v446
    %v543 = vunpack.c.l.b16 %v447
    %v544 = vunpack.c.l.b16 %v448
    %v545 = vunpack.c.l.b16 %v449
    %v546 = vunpack.c.l.b16 %v450
    %v547 = vunpack.c.l.b16 %v451
    %v548 = vunpack.c.l.b16 %v452
    %v549 = vunpack.c.l.b16 %v453
    %v550 = vunpack.c.l.b16 %v454
    %v551 = vunpack.c.l.b16 %v455
    %v552 = vunpack.c.l.b16 %v456
    %v553 = vunpack.c.l.b16 %v457
    %v554 = vunpack.c.l.b16 %v458
    %v555 = vunpack.c.l.b16 %v459
    %v556 = vunpack.c.l.b16 %v460
    %v557 = vunpack.c.l.b16 %v461
    %v558 = vunpack.c.l.b16 %v462
    %v559 = vunpack.c.l.b16 %v463
    %v560 = vunpack.c.l.b16 %v464
    %v561 = vunpack.c.l.b16 %v465
    %v562 = vunpack.c.l.b16 %v466
    %v563 = vunpack.c.l.b16 %v467
    %v564 = vunpack.c.l.b16 %v468
    %v565 = vunpack.c.l.b16 %v469
    %v566 = vunpack.c.l.b16 %v470
    %v567 = vpack.c.b16 %v520, %v519
    %v568 = vpack.c.b16 %v522, %v521
    %v569 = vpack.c.b16 %v524, %v523
    %v570 = vpack.c.b16 %v526, %v525
    %v571 = vpack.c.b16 %v528, %v527
    %v572 = vpack.c.b16 %v530, %v529
    %v573 = vpack.c.b16 %v532, %v531
    %v574 = vpack.c.b16 %v534, %v533
    %v575 = vpack.c.b16 %v536, %v535
    %v576 = vpack.c.b16 %v538, %v537
    %v577 = vpack.c.b16 %v540, %v539
    %v578 = vpack.c.b16 %v542, %v541
    %v579 = vpack.c.b16 %v544, %v543
    %v580 = vpack.c.b16 %v546, %v545
    %v581 = vpack.c.b16 %v548, %v547
    %v582 = vpack.c.b16 %v550, %v549
    %v583 = vpack.c.b16 %v552, %v551
    %v584 = vpack.c.b16 %v554, %v553
    %v585 = vpack.c.b16 %v556, %v555
    %v586 = vpack.c.b16 %v558, %v557
    %v587 = vpack.c.b16 %v560, %v559
    %v588 = vpack.c.b16 %v562, %v561
    %v589 = vpack.c.b16 %v564, %v563
    %v590 = vpack.c.b16 %v566, %v565
    %615 = vmatprep.subr.bf16.mxu0 0
    %616 = vmatpush1.bf16.msra.mxu0 %v567
    %617 = vmatprep.subr.bf16.mxu0 0
    %618 = vmatpush1.bf16.msra.mxu0 %v568
    %619 = vmatprep.subr.bf16.mxu0 0
    %620 = vmatpush1.bf16.msra.mxu0 %v569
    %621 = vmatprep.subr.bf16.mxu0 0
    %622 = vmatpush1.bf16.msra.mxu0 %v570
    %623 = vmatprep.subr.bf16.mxu0 0
    %624 = vmatpush1.bf16.msra.mxu0 %v571
    %625 = vmatprep.subr.bf16.mxu0 0
    %626 = vmatpush1.bf16.msra.mxu0 %v572
    %627 = vmatprep.subr.bf16.mxu0 0
    %628 = vmatpush1.bf16.msra.mxu0 %v573
    %629 = vmatprep.subr.bf16.mxu0 0
    %630 = vmatpush1.bf16.msra.mxu0 %v574
    %631 = vmatprep.subr.bf16.mxu0 0
    %632 = vmatpush1.bf16.msra.mxu0 %v575
    %633 = vmatprep.subr.bf16.mxu0 0
    %634 = vmatpush1.bf16.msra.mxu0 %v576
    %635 = vmatprep.subr.bf16.mxu0 0
    %636 = vmatpush1.bf16.msra.mxu0 %v577
    %637 = vmatprep.subr.bf16.mxu0 0
    %638 = vmatpush1.bf16.msra.mxu0 %v578
    %639 = vmatprep.subr.bf16.mxu0 0
    %640 = vmatpush1.bf16.msra.mxu0 %v579
    %641 = vmatprep.subr.bf16.mxu0 0
    %642 = vmatpush1.bf16.msra.mxu0 %v580
    %643 = vmatprep.subr.bf16.mxu0 0
    %644 = vmatpush1.bf16.msra.mxu0 %v581
    %645 = vmatprep.subr.bf16.mxu0 0
    %646 = vmatpush1.bf16.msra.mxu0 %v582
    %647 = vmatprep.mubr.bf16.mxu0 %v419
    %648 = vmatmul.mubr.bf16.gmra.mrb[0].mxu0 %v417
    %v649 = vpop.f32.mrb[0].mxu0
    %v650 = vadd.f32 0.0, %v649
    %v651 = vpop.f32.mrb[0].mxu0
    %v652 = vpop.f32.mrb[0].mxu0
    %v653 = vpop.f32.mrb[0].mxu0
    %654 = vdwg.mxu0
    %655 = vmatprep.subr.bf16.mxu0 0
    %656 = vmatpush1.bf16.msra.mxu0 %v583
    %657 = vmatprep.subr.bf16.mxu0 0
    %658 = vmatpush1.bf16.msra.mxu0 %v584
    %659 = vmatprep.subr.bf16.mxu0 0
    %660 = vmatpush1.bf16.msra.mxu0 %v585
    %661 = vmatprep.subr.bf16.mxu0 0
    %662 = vmatpush1.bf16.msra.mxu0 %v586
    %663 = vmatprep.subr.bf16.mxu0 0
    %664 = vmatpush1.bf16.msra.mxu0 %v587
    %665 = vmatprep.subr.bf16.mxu0 0
    %666 = vmatpush1.bf16.msra.mxu0 %v588
    %667 = vmatprep.subr.bf16.mxu0 0
    %668 = vmatpush1.bf16.msra.mxu0 %v589
    %669 = vmatprep.subr.bf16.mxu0 0
    %670 = vmatpush1.bf16.msra.mxu0 %v590
    %671 = vmatprep.subr.bf16.mxu0 0
    %672 = vmatpush1.bf16.msra.mxu0 0
    %673 = vmatprep.subr.bf16.mxu0 0
    %674 = vmatpush1.bf16.msra.mxu0 0
    %675 = vmatprep.subr.bf16.mxu0 0
    %676 = vmatpush1.bf16.msra.mxu0 0
    %677 = vmatprep.subr.bf16.mxu0 0
    %678 = vmatpush1.bf16.msra.mxu0 0
    %679 = vmatprep.subr.bf16.mxu0 0
    %680 = vmatpush1.bf16.msra.mxu0 0
    %681 = vmatprep.subr.bf16.mxu0 0
    %682 = vmatpush1.bf16.msra.mxu0 0
    %683 = vmatprep.subr.bf16.mxu0 0
    %684 = vmatpush1.bf16.msra.mxu0 0
    %685 = vmatprep.subr.bf16.mxu0 0
    %686 = vmatpush1.bf16.msra.mxu0 0
    %687 = vmatprep.mubr.bf16.mxu0 0
    %688 = vmatmul.mubr.bf16.gmra.mrb[0].mxu0 %v421
    %v689 = vpop.f32.mrb[0].mxu0
    %v690 = vadd.f32 %v650, %v689
    %v691 = vpop.f32.mrb[0].mxu0
    %v692 = vpop.f32.mrb[0].mxu0
    %v693 = vpop.f32.mrb[0].mxu0
    %694 = vdwg.mxu0
    %v695 = vld [vmem:[#allocation2 + $0x10] sm:$0xff]
    %v696 = vadd.f32 %v695, %v690
    %vm697 = vcmp.ge.f32.partialorder %v696, 0.0
    %v698 = vmul.f32 %v696, 0.2
    %v699 = vsel %vm697, %v696, %v698
    %700 = vst [vmem:[#allocation2 + $0x10] sm:$0xff] %v699
    %v701 = vld [vmem:[#allocation2 + $0x3] sm:$0xff]
    %v702 = vpack.c.bf16 %v701, %v701
    %v703 = vld [vmem:[#allocation2 + $0xc] sm:$0xff]
    %v704 = vpack.c.bf16 %v703, %v703
    %v705 = vld [vmem:[#allocation2 + $0x15] sm:$0xff]
    %v706 = vpack.c.bf16 %v705, %v705
    %s707 = scalar_lea.vmem [#allocation8], 384
    %v708 = vld [vmem:[%s707] sm:$0xf]
    %v709 = vld [vmem:[%s707 + $0x4] sm:$0xf]
    %v710 = vld [vmem:[%s707 + $0x8] sm:$0xf]
    %v711 = vld [vmem:[%s707 + $0xc] sm:$0xf]
    %v712 = vld [vmem:[%s707 + $0x10] sm:$0xf]
    %v713 = vld [vmem:[%s707 + $0x14] sm:$0xf]
    %v714 = vld [vmem:[%s707 + $0x18] sm:$0xf]
    %v715 = vld [vmem:[%s707 + $0x1c] sm:$0xf]
    %v716 = vld [vmem:[%s707 + $0x20] sm:$0xf]
    %v717 = vld [vmem:[%s707 + $0x24] sm:$0xf]
    %v718 = vld [vmem:[%s707 + $0x28] sm:$0xf]
    %v719 = vld [vmem:[%s707 + $0x2c] sm:$0xf]
    %v720 = vld [vmem:[%s707 + $0x30] sm:$0xf]
    %v721 = vld [vmem:[%s707 + $0x34] sm:$0xf]
    %v722 = vld [vmem:[%s707 + $0x38] sm:$0xf]
    %v723 = vld [vmem:[%s707 + $0x3c] sm:$0xf]
    %v724 = vld [vmem:[%s707 + $0x40] sm:$0xf]
    %v725 = vld [vmem:[%s707 + $0x44] sm:$0xf]
    %v726 = vld [vmem:[%s707 + $0x48] sm:$0xf]
    %v727 = vld [vmem:[%s707 + $0x4c] sm:$0xf]
    %v728 = vld [vmem:[%s707 + $0x50] sm:$0xf]
    %v729 = vld [vmem:[%s707 + $0x54] sm:$0xf]
    %v730 = vld [vmem:[%s707 + $0x58] sm:$0xf]
    %v731 = vld [vmem:[%s707 + $0x5c] sm:$0xf]
    %v732 = vld [vmem:[%s707 + $0x60] sm:$0xf]
    %v733 = vld [vmem:[%s707 + $0x64] sm:$0xf]
    %v734 = vld [vmem:[%s707 + $0x68] sm:$0xf]
    %v735 = vld [vmem:[%s707 + $0x6c] sm:$0xf]
    %v736 = vld [vmem:[%s707 + $0x70] sm:$0xf]
    %v737 = vld [vmem:[%s707 + $0x74] sm:$0xf]
    %v738 = vld [vmem:[%s707 + $0x78] sm:$0xf]
    %v739 = vld [vmem:[%s707 + $0x7c] sm:$0xf]
    %v740 = vld [vmem:[%s707 + $0x80] sm:$0xf]
    %v741 = vld [vmem:[%s707 + $0x84] sm:$0xf]
    %v742 = vld [vmem:[%s707 + $0x88] sm:$0xf]
    %v743 = vld [vmem:[%s707 + $0x8c] sm:$0xf]
    %v744 = vld [vmem:[%s707 + $0x90] sm:$0xf]
    %v745 = vld [vmem:[%s707 + $0x94] sm:$0xf]
    %v746 = vld [vmem:[%s707 + $0x98] sm:$0xf]
    %v747 = vld [vmem:[%s707 + $0x9c] sm:$0xf]
    %v748 = vld [vmem:[%s707 + $0xa0] sm:$0xf]
    %v749 = vld [vmem:[%s707 + $0xa4] sm:$0xf]
    %v750 = vld [vmem:[%s707 + $0xa8] sm:$0xf]
    %v751 = vld [vmem:[%s707 + $0xac] sm:$0xf]
    %v752 = vld [vmem:[%s707 + $0xb0] sm:$0xf]
    %v753 = vld [vmem:[%s707 + $0xb4] sm:$0xf]
    %v754 = vld [vmem:[%s707 + $0xb8] sm:$0xf]
    %v755 = vld [vmem:[%s707 + $0xbc] sm:$0xf]
    %v804 = vunpack.c.l.b16 %v708
    %v805 = vunpack.c.l.b16 %v709
    %v806 = vunpack.c.l.b16 %v710
    %v807 = vunpack.c.l.b16 %v711
    %v808 = vunpack.c.l.b16 %v712
    %v809 = vunpack.c.l.b16 %v713
    %v810 = vunpack.c.l.b16 %v714
    %v811 = vunpack.c.l.b16 %v715
    %v812 = vunpack.c.l.b16 %v716
    %v813 = vunpack.c.l.b16 %v717
    %v814 = vunpack.c.l.b16 %v718
    %v815 = vunpack.c.l.b16 %v719
    %v816 = vunpack.c.l.b16 %v720
    %v817 = vunpack.c.l.b16 %v721
    %v818 = vunpack.c.l.b16 %v722
    %v819 = vunpack.c.l.b16 %v723
    %v820 = vunpack.c.l.b16 %v724
    %v821 = vunpack.c.l.b16 %v725
    %v822 = vunpack.c.l.b16 %v726
    %v823 = vunpack.c.l.b16 %v727
    %v824 = vunpack.c.l.b16 %v728
    %v825 = vunpack.c.l.b16 %v729
    %v826 = vunpack.c.l.b16 %v730
    %v827 = vunpack.c.l.b16 %v731
    %v828 = vunpack.c.l.b16 %v732
    %v829 = vunpack.c.l.b16 %v733
    %v830 = vunpack.c.l.b16 %v734
    %v831 = vunpack.c.l.b16 %v735
    %v832 = vunpack.c.l.b16 %v736
    %v833 = vunpack.c.l.b16 %v737
    %v834 = vunpack.c.l.b16 %v738
    %v835 = vunpack.c.l.b16 %v739
    %v836 = vunpack.c.l.b16 %v740
    %v837 = vunpack.c.l.b16 %v741
    %v838 = vunpack.c.l.b16 %v742
    %v839 = vunpack.c.l.b16 %v743
    %v840 = vunpack.c.l.b16 %v744
    %v841 = vunpack.c.l.b16 %v745
    %v842 = vunpack.c.l.b16 %v746
    %v843 = vunpack.c.l.b16 %v747
    %v844 = vunpack.c.l.b16 %v748
    %v845 = vunpack.c.l.b16 %v749
    %v846 = vunpack.c.l.b16 %v750
    %v847 = vunpack.c.l.b16 %v751
    %v848 = vunpack.c.l.b16 %v752
    %v849 = vunpack.c.l.b16 %v753
    %v850 = vunpack.c.l.b16 %v754
    %v851 = vunpack.c.l.b16 %v755
    %v852 = vpack.c.b16 %v805, %v804
    %v853 = vpack.c.b16 %v807, %v806
    %v854 = vpack.c.b16 %v809, %v808
    %v855 = vpack.c.b16 %v811, %v810
    %v856 = vpack.c.b16 %v813, %v812
    %v857 = vpack.c.b16 %v815, %v814
    %v858 = vpack.c.b16 %v817, %v816
    %v859 = vpack.c.b16 %v819, %v818
    %v860 = vpack.c.b16 %v821, %v820
    %v861 = vpack.c.b16 %v823, %v822
    %v862 = vpack.c.b16 %v825, %v824
    %v863 = vpack.c.b16 %v827, %v826
    %v864 = vpack.c.b16 %v829, %v828
    %v865 = vpack.c.b16 %v831, %v830
    %v866 = vpack.c.b16 %v833, %v832
    %v867 = vpack.c.b16 %v835, %v834
    %v868 = vpack.c.b16 %v837, %v836
    %v869 = vpack.c.b16 %v839, %v838
    %v870 = vpack.c.b16 %v841, %v840
    %v871 = vpack.c.b16 %v843, %v842
    %v872 = vpack.c.b16 %v845, %v844
    %v873 = vpack.c.b16 %v847, %v846
    %v874 = vpack.c.b16 %v849, %v848
    %v875 = vpack.c.b16 %v851, %v850
    %900 = vmatprep.subr.bf16.mxu0 0
    %901 = vmatpush1.bf16.msra.mxu0 %v852
    %902 = vmatprep.subr.bf16.mxu0 0
    %903 = vmatpush1.bf16.msra.mxu0 %v853
    %904 = vmatprep.subr.bf16.mxu0 0
    %905 = vmatpush1.bf16.msra.mxu0 %v854
    %906 = vmatprep.subr.bf16.mxu0 0
    %907 = vmatpush1.bf16.msra.mxu0 %v855
    %908 = vmatprep.subr.bf16.mxu0 0
    %909 = vmatpush1.bf16.msra.mxu0 %v856
    %910 = vmatprep.subr.bf16.mxu0 0
    %911 = vmatpush1.bf16.msra.mxu0 %v857
    %912 = vmatprep.subr.bf16.mxu0 0
    %913 = vmatpush1.bf16.msra.mxu0 %v858
    %914 = vmatprep.subr.bf16.mxu0 0
    %915 = vmatpush1.bf16.msra.mxu0 %v859
    %916 = vmatprep.subr.bf16.mxu0 0
    %917 = vmatpush1.bf16.msra.mxu0 %v860
    %918 = vmatprep.subr.bf16.mxu0 0
    %919 = vmatpush1.bf16.msra.mxu0 %v861
    %920 = vmatprep.subr.bf16.mxu0 0
    %921 = vmatpush1.bf16.msra.mxu0 %v862
    %922 = vmatprep.subr.bf16.mxu0 0
    %923 = vmatpush1.bf16.msra.mxu0 %v863
    %924 = vmatprep.subr.bf16.mxu0 0
    %925 = vmatpush1.bf16.msra.mxu0 %v864
    %926 = vmatprep.subr.bf16.mxu0 0
    %927 = vmatpush1.bf16.msra.mxu0 %v865
    %928 = vmatprep.subr.bf16.mxu0 0
    %929 = vmatpush1.bf16.msra.mxu0 %v866
    %930 = vmatprep.subr.bf16.mxu0 0
    %931 = vmatpush1.bf16.msra.mxu0 %v867
    %932 = vmatprep.mubr.bf16.mxu0 %v704
    %933 = vmatmul.mubr.bf16.gmra.mrb[0].mxu0 %v702
    %v934 = vpop.f32.mrb[0].mxu0
    %v935 = vadd.f32 0.0, %v934
    %v936 = vpop.f32.mrb[0].mxu0
    %v937 = vpop.f32.mrb[0].mxu0
    %v938 = vpop.f32.mrb[0].mxu0
    %939 = vdwg.mxu0
    %940 = vmatprep.subr.bf16.mxu0 0
    %941 = vmatpush1.bf16.msra.mxu0 %v868
    %942 = vmatprep.subr.bf16.mxu0 0
    %943 = vmatpush1.bf16.msra.mxu0 %v869
    %944 = vmatprep.subr.bf16.mxu0 0
    %945 = vmatpush1.bf16.msra.mxu0 %v870
    %946 = vmatprep.subr.bf16.mxu0 0
    %947 = vmatpush1.bf16.msra.mxu0 %v871
    %948 = vmatprep.subr.bf16.mxu0 0
    %949 = vmatpush1.bf16.msra.mxu0 %v872
    %950 = vmatprep.subr.bf16.mxu0 0
    %951 = vmatpush1.bf16.msra.mxu0 %v873
    %952 = vmatprep.subr.bf16.mxu0 0
    %953 = vmatpush1.bf16.msra.mxu0 %v874
    %954 = vmatprep.subr.bf16.mxu0 0
    %955 = vmatpush1.bf16.msra.mxu0 %v875
    %956 = vmatprep.subr.bf16.mxu0 0
    %957 = vmatpush1.bf16.msra.mxu0 0
    %958 = vmatprep.subr.bf16.mxu0 0
    %959 = vmatpush1.bf16.msra.mxu0 0
    %960 = vmatprep.subr.bf16.mxu0 0
    %961 = vmatpush1.bf16.msra.mxu0 0
    %962 = vmatprep.subr.bf16.mxu0 0
    %963 = vmatpush1.bf16.msra.mxu0 0
    %964 = vmatprep.subr.bf16.mxu0 0
    %965 = vmatpush1.bf16.msra.mxu0 0
    %966 = vmatprep.subr.bf16.mxu0 0
    %967 = vmatpush1.bf16.msra.mxu0 0
    %968 = vmatprep.subr.bf16.mxu0 0
    %969 = vmatpush1.bf16.msra.mxu0 0
    %970 = vmatprep.subr.bf16.mxu0 0
    %971 = vmatpush1.bf16.msra.mxu0 0
    %972 = vmatprep.mubr.bf16.mxu0 0
    %973 = vmatmul.mubr.bf16.gmra.mrb[0].mxu0 %v706
    %v974 = vpop.f32.mrb[0].mxu0
    %v975 = vadd.f32 %v935, %v974
    %v976 = vpop.f32.mrb[0].mxu0
    %v977 = vpop.f32.mrb[0].mxu0
    %v978 = vpop.f32.mrb[0].mxu0
    %979 = vdwg.mxu0
    %v980 = vld [vmem:[#allocation2 + $0x10] sm:$0xff]
    %v981 = vadd.f32 %v980, %v975
    %vm982 = vcmp.ge.f32.partialorder %v981, 0.0
    %v983 = vmul.f32 %v981, 0.2
    %v984 = vsel %vm982, %v981, %v983
    %985 = vst [vmem:[#allocation2 + $0x10] sm:$0xff] %v984
    %v986 = vld [vmem:[#allocation2 + $0xf] sm:$0xff]
    %v987 = vpack.c.bf16 %v986, %v986
    %v988 = vld [vmem:[#allocation2 + $0x10] sm:$0xff]
    %v989 = vpack.c.bf16 %v988, %v988
    %v990 = vld [vmem:[#allocation2 + $0x11] sm:$0xff]
    %v991 = vpack.c.bf16 %v990, %v990
    %v992 = vld [vmem:[#allocation9] sm:$0xff]
    %v993 = vld [vmem:[#allocation9 + $0x8] sm:$0xff]
    %v994 = vld [vmem:[#allocation9 + $0x10] sm:$0xff]
    %v995 = vld [vmem:[#allocation9 + $0x18] sm:$0xff]
    %v996 = vld [vmem:[#allocation9 + $0x20] sm:$0xff]
    %v997 = vld [vmem:[#allocation9 + $0x28] sm:$0xff]
    %v998 = vld [vmem:[#allocation9 + $0x30] sm:$0xff]
    %v999 = vld [vmem:[#allocation9 + $0x38] sm:$0xff]
    %v1000 = vld [vmem:[#allocation9 + $0x40] sm:$0xff]
    %v1001 = vld [vmem:[#allocation9 + $0x48] sm:$0xff]
    %v1002 = vld [vmem:[#allocation9 + $0x50] sm:$0xff]
    %v1003 = vld [vmem:[#allocation9 + $0x58] sm:$0xff]
    %v1004 = vld [vmem:[#allocation9 + $0x60] sm:$0xff]
    %v1005 = vld [vmem:[#allocation9 + $0x68] sm:$0xff]
    %v1006 = vld [vmem:[#allocation9 + $0x70] sm:$0xff]
    %v1007 = vld [vmem:[#allocation9 + $0x78] sm:$0xff]
    %v1008 = vld [vmem:[#allocation9 + $0x80] sm:$0xff]
    %v1009 = vld [vmem:[#allocation9 + $0x88] sm:$0xff]
    %v1010 = vld [vmem:[#allocation9 + $0x90] sm:$0xff]
    %v1011 = vld [vmem:[#allocation9 + $0x98] sm:$0xff]
    %v1012 = vld [vmem:[#allocation9 + $0xa0] sm:$0xff]
    %v1013 = vld [vmem:[#allocation9 + $0xa8] sm:$0xff]
    %v1014 = vld [vmem:[#allocation9 + $0xb0] sm:$0xff]
    %v1015 = vld [vmem:[#allocation9 + $0xb8] sm:$0xff]
    %v1016 = vld [vmem:[#allocation9 + $0xc0] sm:$0xff]
    %v1017 = vld [vmem:[#allocation9 + $0xc8] sm:$0xff]
    %v1018 = vld [vmem:[#allocation9 + $0xd0] sm:$0xff]
    %v1019 = vld [vmem:[#allocation9 + $0xd8] sm:$0xff]
    %v1020 = vld [vmem:[#allocation9 + $0xe0] sm:$0xff]
    %v1021 = vld [vmem:[#allocation9 + $0xe8] sm:$0xff]
    %v1022 = vld [vmem:[#allocation9 + $0xf0] sm:$0xff]
    %v1023 = vld [vmem:[#allocation9 + $0xf8] sm:$0xff]
    %v1024 = vld [vmem:[#allocation9 + $0x100] sm:$0xff]
    %v1025 = vld [vmem:[#allocation9 + $0x108] sm:$0xff]
    %v1026 = vld [vmem:[#allocation9 + $0x110] sm:$0xff]
    %v1027 = vld [vmem:[#allocation9 + $0x118] sm:$0xff]
    %v1028 = vld [vmem:[#allocation9 + $0x120] sm:$0xff]
    %v1029 = vld [vmem:[#allocation9 + $0x128] sm:$0xff]
    %v1030 = vld [vmem:[#allocation9 + $0x130] sm:$0xff]
    %v1031 = vld [vmem:[#allocation9 + $0x138] sm:$0xff]
    %v1032 = vld [vmem:[#allocation9 + $0x140] sm:$0xff]
    %v1033 = vld [vmem:[#allocation9 + $0x148] sm:$0xff]
    %v1034 = vld [vmem:[#allocation9 + $0x150] sm:$0xff]
    %v1035 = vld [vmem:[#allocation9 + $0x158] sm:$0xff]
    %v1036 = vld [vmem:[#allocation9 + $0x160] sm:$0xff]
    %v1037 = vld [vmem:[#allocation9 + $0x168] sm:$0xff]
    %v1038 = vld [vmem:[#allocation9 + $0x170] sm:$0xff]
    %v1039 = vld [vmem:[#allocation9 + $0x178] sm:$0xff]
    %v1088 = vunpack.c.l.b16 %v992
    %v1089 = vunpack.c.h.b16 %v992
    %v1090 = vunpack.c.l.b16 %v993
    %v1091 = vunpack.c.h.b16 %v993
    %v1092 = vunpack.c.l.b16 %v994
    %v1093 = vunpack.c.h.b16 %v994
    %v1094 = vunpack.c.l.b16 %v995
    %v1095 = vunpack.c.h.b16 %v995
    %v1096 = vunpack.c.l.b16 %v996
    %v1097 = vunpack.c.h.b16 %v996
    %v1098 = vunpack.c.l.b16 %v997
    %v1099 = vunpack.c.h.b16 %v997
    %v1100 = vunpack.c.l.b16 %v998
    %v1101 = vunpack.c.h.b16 %v998
    %v1102 = vunpack.c.l.b16 %v999
    %v1103 = vunpack.c.h.b16 %v999
    %v1104 = vunpack.c.l.b16 %v1000
    %v1105 = vunpack.c.h.b16 %v1000
    %v1106 = vunpack.c.l.b16 %v1001
    %v1107 = vunpack.c.h.b16 %v1001
    %v1108 = vunpack.c.l.b16 %v1002
    %v1109 = vunpack.c.h.b16 %v1002
    %v1110 = vunpack.c.l.b16 %v1003
    %v1111 = vunpack.c.h.b16 %v1003
    %v1112 = vunpack.c.l.b16 %v1004
    %v1113 = vunpack.c.h.b16 %v1004
    %v1114 = vunpack.c.l.b16 %v1005
    %v1115 = vunpack.c.h.b16 %v1005
    %v1116 = vunpack.c.l.b16 %v1006
    %v1117 = vunpack.c.h.b16 %v1006
    %v1118 = vunpack.c.l.b16 %v1007
    %v1119 = vunpack.c.h.b16 %v1007
    %v1120 = vunpack.c.l.b16 %v1008
    %v1121 = vunpack.c.h.b16 %v1008
    %v1122 = vunpack.c.l.b16 %v1009
    %v1123 = vunpack.c.h.b16 %v1009
    %v1124 = vunpack.c.l.b16 %v1010
    %v1125 = vunpack.c.h.b16 %v1010
    %v1126 = vunpack.c.l.b16 %v1011
    %v1127 = vunpack.c.h.b16 %v1011
    %v1128 = vunpack.c.l.b16 %v1012
    %v1129 = vunpack.c.h.b16 %v1012
    %v1130 = vunpack.c.l.b16 %v1013
    %v1131 = vunpack.c.h.b16 %v1013
    %v1132 = vunpack.c.l.b16 %v1014
    %v1133 = vunpack.c.h.b16 %v1014
    %v1134 = vunpack.c.l.b16 %v1015
    %v1135 = vunpack.c.h.b16 %v1015
    %v1136 = vunpack.c.l.b16 %v1016
    %v1137 = vunpack.c.h.b16 %v1016
    %v1138 = vunpack.c.l.b16 %v1017
    %v1139 = vunpack.c.h.b16 %v1017
    %v1140 = vunpack.c.l.b16 %v1018
    %v1141 = vunpack.c.h.b16 %v1018
    %v1142 = vunpack.c.l.b16 %v1019
    %v1143 = vunpack.c.h.b16 %v1019
    %v1144 = vunpack.c.l.b16 %v1020
    %v1145 = vunpack.c.h.b16 %v1020
    %v1146 = vunpack.c.l.b16 %v1021
    %v1147 = vunpack.c.h.b16 %v1021
    %v1148 = vunpack.c.l.b16 %v1022
    %v1149 = vunpack.c.h.b16 %v1022
    %v1150 = vunpack.c.l.b16 %v1023
    %v1151 = vunpack.c.h.b16 %v1023
    %v1152 = vunpack.c.l.b16 %v1024
    %v1153 = vunpack.c.h.b16 %v1024
    %v1154 = vunpack.c.l.b16 %v1025
    %v1155 = vunpack.c.h.b16 %v1025
    %v1156 = vunpack.c.l.b16 %v1026
    %v1157 = vunpack.c.h.b16 %v1026
    %v1158 = vunpack.c.l.b16 %v1027
    %v1159 = vunpack.c.h.b16 %v1027
    %v1160 = vunpack.c.l.b16 %v1028
    %v1161 = vunpack.c.h.b16 %v1028
    %v1162 = vunpack.c.l.b16 %v1029
    %v1163 = vunpack.c.h.b16 %v1029
    %v1164 = vunpack.c.l.b16 %v1030
    %v1165 = vunpack.c.h.b16 %v1030
    %v1166 = vunpack.c.l.b16 %v1031
    %v1167 = vunpack.c.h.b16 %v1031
    %v1168 = vunpack.c.l.b16 %v1032
    %v1169 = vunpack.c.h.b16 %v1032
    %v1170 = vunpack.c.l.b16 %v1033
    %v1171 = vunpack.c.h.b16 %v1033
    %v1172 = vunpack.c.l.b16 %v1034
    %v1173 = vunpack.c.h.b16 %v1034
    %v1174 = vunpack.c.l.b16 %v1035
    %v1175 = vunpack.c.h.b16 %v1035
    %v1176 = vunpack.c.l.b16 %v1036
    %v1177 = vunpack.c.h.b16 %v1036
    %v1178 = vunpack.c.l.b16 %v1037
    %v1179 = vunpack.c.h.b16 %v1037
    %v1180 = vunpack.c.l.b16 %v1038
    %v1181 = vunpack.c.h.b16 %v1038
    %v1182 = vunpack.c.l.b16 %v1039
    %v1183 = vunpack.c.h.b16 %v1039
    %v1184 = vpack.c.b16 %v1090, %v1088
    %v1185 = vpack.c.b16 %v1091, %v1089
    %v1186 = vpack.c.b16 %v1094, %v1092
    %v1187 = vpack.c.b16 %v1095, %v1093
    %v1188 = vpack.c.b16 %v1098, %v1096
    %v1189 = vpack.c.b16 %v1099, %v1097
    %v1190 = vpack.c.b16 %v1102, %v1100
    %v1191 = vpack.c.b16 %v1103, %v1101
    %v1192 = vpack.c.b16 %v1106, %v1104
    %v1193 = vpack.c.b16 %v1107, %v1105
    %v1194 = vpack.c.b16 %v1110, %v1108
    %v1195 = vpack.c.b16 %v1111, %v1109
    %v1196 = vpack.c.b16 %v1114, %v1112
    %v1197 = vpack.c.b16 %v1115, %v1113
    %v1198 = vpack.c.b16 %v1118, %v1116
    %v1199 = vpack.c.b16 %v1119, %v1117
    %v1200 = vpack.c.b16 %v1122, %v1120
    %v1201 = vpack.c.b16 %v1123, %v1121
    %v1202 = vpack.c.b16 %v1126, %v1124
    %v1203 = vpack.c.b16 %v1127, %v1125
    %v1204 = vpack.c.b16 %v1130, %v1128
    %v1205 = vpack.c.b16 %v1131, %v1129
    %v1206 = vpack.c.b16 %v1134, %v1132
    %v1207 = vpack.c.b16 %v1135, %v1133
    %v1208 = vpack.c.b16 %v1138, %v1136
    %v1209 = vpack.c.b16 %v1139, %v1137
    %v1210 = vpack.c.b16 %v1142, %v1140
    %v1211 = vpack.c.b16 %v1143, %v1141
    %v1212 = vpack.c.b16 %v1146, %v1144
    %v1213 = vpack.c.b16 %v1147, %v1145
    %v1214 = vpack.c.b16 %v1150, %v1148
    %v1215 = vpack.c.b16 %v1151, %v1149
    %v1216 = vpack.c.b16 %v1154, %v1152
    %v1217 = vpack.c.b16 %v1155, %v1153
    %v1218 = vpack.c.b16 %v1158, %v1156
    %v1219 = vpack.c.b16 %v1159, %v1157
    %v1220 = vpack.c.b16 %v1162, %v1160
    %v1221 = vpack.c.b16 %v1163, %v1161
    %v1222 = vpack.c.b16 %v1166, %v1164
    %v1223 = vpack.c.b16 %v1167, %v1165
    %v1224 = vpack.c.b16 %v1170, %v1168
    %v1225 = vpack.c.b16 %v1171, %v1169
    %v1226 = vpack.c.b16 %v1174, %v1172
    %v1227 = vpack.c.b16 %v1175, %v1173
    %v1228 = vpack.c.b16 %v1178, %v1176
    %v1229 = vpack.c.b16 %v1179, %v1177
    %v1230 = vpack.c.b16 %v1182, %v1180
    %v1231 = vpack.c.b16 %v1183, %v1181
    %1280 = vmatprep.subr.bf16.mxu0 %v1185
    %1281 = vmatpush1.bf16.msra.mxu0 %v1184
    %1282 = vmatprep.subr.bf16.mxu0 %v1187
    %1283 = vmatpush1.bf16.msra.mxu0 %v1186
    %1284 = vmatprep.subr.bf16.mxu0 %v1189
    %1285 = vmatpush1.bf16.msra.mxu0 %v1188
    %1286 = vmatprep.subr.bf16.mxu0 %v1191
    %1287 = vmatpush1.bf16.msra.mxu0 %v1190
    %1288 = vmatprep.subr.bf16.mxu0 %v1193
    %1289 = vmatpush1.bf16.msra.mxu0 %v1192
    %1290 = vmatprep.subr.bf16.mxu0 %v1195
    %1291 = vmatpush1.bf16.msra.mxu0 %v1194
    %1292 = vmatprep.subr.bf16.mxu0 %v1197
    %1293 = vmatpush1.bf16.msra.mxu0 %v1196
    %1294 = vmatprep.subr.bf16.mxu0 %v1199
    %1295 = vmatpush1.bf16.msra.mxu0 %v1198
    %1296 = vmatprep.subr.bf16.mxu0 %v1201
    %1297 = vmatpush1.bf16.msra.mxu0 %v1200
    %1298 = vmatprep.subr.bf16.mxu0 %v1203
    %1299 = vmatpush1.bf16.msra.mxu0 %v1202
    %1300 = vmatprep.subr.bf16.mxu0 %v1205
    %1301 = vmatpush1.bf16.msra.mxu0 %v1204
    %1302 = vmatprep.subr.bf16.mxu0 %v1207
    %1303 = vmatpush1.bf16.msra.mxu0 %v1206
    %1304 = vmatprep.subr.bf16.mxu0 %v1209
    %1305 = vmatpush1.bf16.msra.mxu0 %v1208
    %1306 = vmatprep.subr.bf16.mxu0 %v1211
    %1307 = vmatpush1.bf16.msra.mxu0 %v1210
    %1308 = vmatprep.subr.bf16.mxu0 %v1213
    %1309 = vmatpush1.bf16.msra.mxu0 %v1212
    %1310 = vmatprep.subr.bf16.mxu0 %v1215
    %1311 = vmatpush1.bf16.msra.mxu0 %v1214
    %1312 = vmatprep.mubr.bf16.mxu0 %v989
    %1313 = vmatmul.mubr.bf16.gmra.mrb[0].mxu0 %v987
    %v1314 = vpop.f32.mrb[0].mxu0
    %v1315 = vadd.f32 0.0, %v1314
    %v1316 = vpop.f32.mrb[0].mxu0
    %v1317 = vadd.f32 0.0, %v1316
    %v1318 = vpop.f32.mrb[0].mxu0
    %v1319 = vpop.f32.mrb[0].mxu0
    %1320 = vdwg.mxu0
    %1321 = vmatprep.subr.bf16.mxu0 %v1217
    %1322 = vmatpush1.bf16.msra.mxu0 %v1216
    %1323 = vmatprep.subr.bf16.mxu0 %v1219
    %1324 = vmatpush1.bf16.msra.mxu0 %v1218
    %1325 = vmatprep.subr.bf16.mxu0 %v1221
    %1326 = vmatpush1.bf16.msra.mxu0 %v1220
    %1327 = vmatprep.subr.bf16.mxu0 %v1223
    %1328 = vmatpush1.bf16.msra.mxu0 %v1222
    %1329 = vmatprep.subr.bf16.mxu0 %v1225
    %1330 = vmatpush1.bf16.msra.mxu0 %v1224
    %1331 = vmatprep.subr.bf16.mxu0 %v1227
    %1332 = vmatpush1.bf16.msra.mxu0 %v1226
    %1333 = vmatprep.subr.bf16.mxu0 %v1229
    %1334 = vmatpush1.bf16.msra.mxu0 %v1228
    %1335 = vmatprep.subr.bf16.mxu0 %v1231
    %1336 = vmatpush1.bf16.msra.mxu0 %v1230
    %1337 = vmatprep.subr.bf16.mxu0 0
    %1338 = vmatpush1.bf16.msra.mxu0 0
    %1339 = vmatprep.subr.bf16.mxu0 0
    %1340 = vmatpush1.bf16.msra.mxu0 0
    %1341 = vmatprep.subr.bf16.mxu0 0
    %1342 = vmatpush1.bf16.msra.mxu0 0
    %1343 = vmatprep.subr.bf16.mxu0 0
    %1344 = vmatpush1.bf16.msra.mxu0 0
    %1345 = vmatprep.subr.bf16.mxu0 0
    %1346 = vmatpush1.bf16.msra.mxu0 0
    %1347 = vmatprep.subr.bf16.mxu0 0
    %1348 = vmatpush1.bf16.msra.mxu0 0
    %1349 = vmatprep.subr.bf16.mxu0 0
    %1350 = vmatpush1.bf16.msra.mxu0 0
    %1351 = vmatprep.subr.bf16.mxu0 0
    %1352 = vmatpush1.bf16.msra.mxu0 0
    %1353 = vmatprep.mubr.bf16.mxu0 0
    %1354 = vmatmul.mubr.bf16.gmra.mrb[0].mxu0 %v991
    %v1355 = vpop.f32.mrb[0].mxu0
    %v1356 = vadd.f32 %v1315, %v1355
    %v1357 = vpop.f32.mrb[0].mxu0
    %v1358 = vadd.f32 %v1317, %v1357
    %v1359 = vpop.f32.mrb[0].mxu0
    %v1360 = vpop.f32.mrb[0].mxu0
    %1361 = vdwg.mxu0
    %vm1362 = vcmp.ge.f32.partialorder %v1356, 0.0
    %vm1363 = vcmp.ge.f32.partialorder %v1358, 0.0
    %v1364 = vmul.f32 %v1356, 0.2
    %v1365 = vmul.f32 %v1358, 0.2
    %v1366 = vsel %vm1362, %v1356, %v1364
    %v1367 = vsel %vm1363, %v1358, %v1365
    %v1368 = vpack.c.bf16 %v1366, %v1366
    %v1369 = vpack.c.bf16 %v1367, %v1367
    %v1372 = vunpack.c.l.b16 %v1368
    %v1373 = vunpack.c.l.b16 %v1369
    %v1374 = vpack.c.b16 %v1373, %v1372
    %1376 = vst [vmem:[#allocation11] sm:$0xff] %v1374
    // Predicated region
    $region34: #{forward.2} parent=1 // pred_check
      _
    $region35: #{forward.2} parent=1 // pred_check_branch
      %1378 = sbr.rel (0) target = $region37
    $region36: #{forward.2} parent=1 // pred_region
      %s1380 = ssub.s32 128, 128
      %1381 = vsyncadd [#allocation5], %s1380
      %s1383 = sshll.u32 [#allocation11], 4
      %s1384 = int_to_ptr.vmem [resolvable:$true] %s1383
      %1386 = dma.vmem_to_hbm [thread:$0]  %s1384, 128, %s4, [#allocation5]
    $region37: #{forward.2} parent=1 // pred_fallthru
      _
    // Predicated region
    $region38: #{forward.2} parent=1 // pred_check
      _
    $region39: #{forward.2} parent=1 // pred_check_branch
      %1388 = sbr.rel (0) target = $region41
    $region40: #{forward.2} parent=1 // pred_region
      %1389 = dma.done [#allocation5], 128
    $region41: #{forward.2} parent=1 // pred_fallthru
      _
    %1390 = vsyncpa [#allocation4], 1
    %1391 = vsyncpa [#allocation7], 1
    %1392 = vsyncpa [#allocation10], 1
    %1393 = vsyncpa [#allocation5], 1

</llo_original>
